<compile_context>
chip_gen: v5e
topology: v5e:2x2
jax: 0.10.0
libtpu: 0.0.40
codegen_flags: <defaults>
</compile_context>

<pallas_src>
import jax
import jax.numpy as jnp
from jax import lax
from jax.experimental import pallas as pl
from jax.experimental.pallas import tpu as pltpu

# small synthetic hyper-parameters consistent with the module's forward
B, L, D, H, LAYERS, E = 2, 8, 32, 4, 2, 32   # batch, seq, width, heads, layers, embed
HD = D // H
NEG_INF = -1e30
SCALE = 1.0 / (HD ** 0.5)


def _layernorm(x, w, b, eps=1e-5):
    mu = jnp.mean(x, axis=-1, keepdims=True)
    var = jnp.mean((x - mu) ** 2, axis=-1, keepdims=True)
    return (x - mu) * lax.rsqrt(var + eps) * w + b


# ------------------------------ fused kernel --------------------------------

def fused_text_encoder_kernel(
        eot_ref,                                    # scalar prefetch (SMEM), (B,) int32
        prompts_ref, pos_ref, mask_ref,             # (B*L,D) f32, (L,D) f32, (L,L) f32
        wqkv_ref, wout_ref, w1_ref, w2_ref,         # streamed per-layer bf16 blocks (1,...)
        ln1w_ref, ln1b_ref, bqkv_ref, bout_ref,     # resident (LAYERS,1,dim) f32 stacks
        ln2w_ref, ln2b_ref, b1_ref, b2_ref,
        lnfw_ref, lnfb_ref, proj_ref,               # head params (resident constants)
        out_ref,                                    # (B, E) f32
        x_scratch):                                 # VMEM (B*L, D) f32, resident over layers
    layer = pl.program_id(0)

    # layer 0: x = prompts + positional_embedding (folded positional add)
    @pl.when(layer == 0)
    def _():
        pos = pos_ref[...]
        for b in range(B):                          # static, aligned sublane slices
            r0 = b * L
            x_scratch[r0:r0 + L, :] = prompts_ref[r0:r0 + L, :] + pos

    x = x_scratch[...]                              # (B*L, D) f32
    mask = mask_ref[...]                            # (L, L) causal mask, f32

    # ---- multi-head self-attention (causal) ---------------------------------
    h = _layernorm(x, ln1w_ref[layer], ln1b_ref[layer])
    qkv = jnp.dot(h.astype(jnp.bfloat16), wqkv_ref[0],
                  preferred_element_type=jnp.float32) + bqkv_ref[layer]   # (B*L, 3D)
    q = qkv[:, :D] * SCALE
    k = qkv[:, D:2 * D]
    v = qkv[:, 2 * D:]

    wout = wout_ref[0]                              # (D, D) bf16
    bout = bout_ref[layer]                          # (1, D) f32

    # per-head contributions accumulate straight into the Wout-projected output
    # (no concat, only one head's output live at a time)
    x1_parts = []
    for b in range(B):                              # static; causal attention is per-prompt
        r0 = b * L
        q_b = q[r0:r0 + L, :]
        k_b = k[r0:r0 + L, :]
        v_b = v[r0:r0 + L, :]
        acc = None
        for hh in range(H):                         # static, fully unrolled
            c0 = hh * HD
            s = jnp.einsum('qd,kd->qk', q_b[:, c0:c0 + HD], k_b[:, c0:c0 + HD],
                           preferred_element_type=jnp.float32) + mask
            s = s - jnp.max(s, axis=-1, keepdims=True)
            p = jnp.exp(s)
            p = p * pl.reciprocal(jnp.sum(p, axis=-1, keepdims=True), approx=True)
            o = jnp.dot(p, v_b[:, c0:c0 + HD],
                        preferred_element_type=jnp.float32)              # (L, HD)
            contrib = jnp.dot(o.astype(jnp.bfloat16), wout[c0:c0 + HD, :],
                              preferred_element_type=jnp.float32)        # (L, D)
            acc = contrib if acc is None else acc + contrib
        x1_parts.append(x[r0:r0 + L, :] + acc + bout)
    x1 = jnp.concatenate(x1_parts, axis=0)          # (B*L, D) sublane-dim stack

    # ---- MLP with QuickGELU (activation in bf16) -----------------------------
    h2 = _layernorm(x1, ln2w_ref[layer], ln2b_ref[layer])
    m = jnp.dot(h2.astype(jnp.bfloat16), w1_ref[0],
                preferred_element_type=jnp.float32) + b1_ref[layer]       # (B*L, 4D) f32
    m = m.astype(jnp.bfloat16)
    m = m * jax.nn.sigmoid(m * 1.702)               # QuickGELU in bf16
    mlp = jnp.dot(m, w2_ref[0],
                  preferred_element_type=jnp.float32) + b2_ref[layer]
    x_scratch[...] = x1 + mlp

    # ---- last layer: EOT gather + ln_final + text_projection ----------------
    @pl.when(layer == pl.num_programs(0) - 1)
    def _():
        rows = []
        for b in range(B):                          # static; dynamic row gather per prompt
            rows.append(x_scratch[pl.ds(b * L + eot_ref[b], 1), :])       # (1, D)
        pooled = jnp.concatenate(rows, axis=0)      # (B, D)
        pooled = _layernorm(pooled, lnfw_ref[...], lnfb_ref[...])
        out_ref[...] = jnp.dot(pooled.astype(jnp.bfloat16), proj_ref[...],
                               preferred_element_type=jnp.float32)


# ------------------------------- wrapper -------------------------------------

def text_encoder_forward(prompts, tokenized_prompts, params):
    # TODO(synk): the argmax over token ids (EOT index) is tiny scalar glue and
    # is computed in plain JAX, then scalar-prefetched into SMEM so the gather
    # and projection head run inside the fused kernel.
    eot = jnp.argmax(tokenized_prompts, axis=-1).astype(jnp.int32)

    # causal mask built once, passed as a resident constant block
    row = jnp.arange(L)[:, None]
    col = jnp.arange(L)[None, :]
    mask = jnp.where(col <= row, 0.0, NEG_INF).astype(jnp.float32)

    layers = params['layers']

    def stack(name, dtype=None):
        a = jnp.stack([lp[name] for lp in layers], axis=0)
        return a if dtype is None else a.astype(dtype)

    # big matmul weights: bf16, streamed per layer (exactly once per forward)
    big_arrays = [
        stack('wqkv_t', jnp.bfloat16),   # (LAYERS, D, 3D)
        stack('wout_t', jnp.bfloat16),   # (LAYERS, D, D)
        stack('w1_t',   jnp.bfloat16),   # (LAYERS, D, 4D)
        stack('w2_t',   jnp.bfloat16),   # (LAYERS, 4D, D)
    ]
    # tiny per-layer params: resident constant stacks, indexed by layer in-kernel
    small_arrays = [
        stack('ln1_w'), stack('ln1_b'), stack('bqkv'), stack('bout'),
        stack('ln2_w'), stack('ln2_b'), stack('b1'), stack('b2'),
    ]
    head_arrays = [params['lnf_w'], params['lnf_b'],
                   params['proj'].astype(jnp.bfloat16)]

    prompts2d = prompts.reshape(B * L, D)           # layout plumbing only

    def const_spec(a):
        nd = a.ndim
        return pl.BlockSpec(a.shape, lambda l_, eot_, nd=nd: (0,) * nd)

    def stream_spec(a):
        nd = a.ndim
        return pl.BlockSpec((1,) + a.shape[1:],
                            lambda l_, eot_, nd=nd: (l_,) + (0,) * (nd - 1))

    grid_spec = pltpu.PrefetchScalarGridSpec(
        num_scalar_prefetch=1,
        grid=(LAYERS,),
        in_specs=([const_spec(prompts2d),
                   const_spec(params['pos']),
                   const_spec(mask)]
                  + [stream_spec(a) for a in big_arrays]
                  + [const_spec(a) for a in small_arrays]
                  + [const_spec(a) for a in head_arrays]),
        out_specs=pl.BlockSpec((B, E), lambda l_, eot_: (0, 0)),
        scratch_shapes=[pltpu.VMEM((B * L, D), jnp.float32)],
    )

    out = pl.pallas_call(
        fused_text_encoder_kernel,
        out_shape=jax.ShapeDtypeStruct((B, E), jnp.float32),
        grid_spec=grid_spec,
        compiler_params=pltpu.CompilerParams(
            dimension_semantics=("arbitrary",),
            vmem_limit_bytes=48 * 1024 * 1024),
    )(eot, prompts2d, params['pos'], mask,
      *big_arrays, *small_arrays, *head_arrays)
    return out


# --------------------------- pure-JAX reference -------------------------------

def reference_forward(prompts, tokenized_prompts, params):
    x = prompts + params['pos'][None]
    row = jnp.arange(L)[:, None]
    col = jnp.arange(L)[None, :]
    mask = jnp.where(col <= row, 0.0, NEG_INF)
    for lp in params['layers']:
        h = _layernorm(x, lp['ln1_w'], lp['ln1_b'])
        qkv = h @ lp['wqkv_t'] + lp['bqkv']
        q, k, v = jnp.split(qkv, 3, axis=-1)
        qh = q.reshape(B, L, H, HD).transpose(0, 2, 1, 3)
        kh = k.reshape(B, L, H, HD).transpose(0, 2, 1, 3)
        vh = v.reshape(B, L, H, HD).transpose(0, 2, 1, 3)
        s = jnp.einsum('bhqd,bhkd->bhqk', qh, kh) / (HD ** 0.5) + mask
        p = jax.nn.softmax(s, axis=-1)
        o = jnp.einsum('bhqk,bhkd->bhqd', p, vh).transpose(0, 2, 1, 3).reshape(B, L, D)
        x = x + (o @ lp['wout_t'] + lp['bout'])
        h2 = _layernorm(x, lp['ln2_w'], lp['ln2_b'])
        m = h2 @ lp['w1_t'] + lp['b1']
        m = m * jax.nn.sigmoid(1.702 * m)
        x = x + (m @ lp['w2_t'] + lp['b2'])
    eot = jnp.argmax(tokenized_prompts, axis=-1)
    x_eot = x[jnp.arange(B), eot]
    x_eot = _layernorm(x_eot, params['lnf_w'], params['lnf_b'])
    return x_eot @ params['proj']


# --------------------------------- params -------------------------------------

def init_params(key):
    keys = jax.random.split(key, 4 + LAYERS)
    params = {
        'pos': 0.01 * jax.random.normal(keys[0], (L, D), jnp.float32),
        'lnf_w': jnp.ones((1, D), jnp.float32)
                 + 0.05 * jax.random.normal(keys[1], (1, D), jnp.float32),
        'lnf_b': 0.02 * jax.random.normal(keys[2], (1, D), jnp.float32),
        'proj': 0.05 * jax.random.normal(keys[3], (D, E), jnp.float32),
        'layers': [],
    }
    for i in range(LAYERS):
        k = jax.random.split(keys[4 + i], 8)
        params['layers'].append({
            'ln1_w': jnp.ones((1, D), jnp.float32),
            'ln1_b': jnp.zeros((1, D), jnp.float32),
            # weights stored pre-transposed so kernels compute x @ W_t + b
            'wqkv_t': 0.05 * jax.random.normal(k[0], (D, 3 * D), jnp.float32),
            'bqkv':   0.02 * jax.random.normal(k[1], (1, 3 * D), jnp.float32),
            'wout_t': 0.05 * jax.random.normal(k[2], (D, D), jnp.float32),
            'bout':   0.02 * jax.random.normal(k[3], (1, D), jnp.float32),
            'ln2_w': jnp.ones((1, D), jnp.float32),
            'ln2_b': jnp.zeros((1, D), jnp.float32),
            'w1_t': 0.05 * jax.random.normal(k[4], (D, 4 * D), jnp.float32),
            'b1':   0.02 * jax.random.normal(k[5], (1, 4 * D), jnp.float32),
            'w2_t': 0.05 * jax.random.normal(k[6], (4 * D, D), jnp.float32),
            'b2':   0.02 * jax.random.normal(k[7], (1, D), jnp.float32),
        })
    return params


if __name__ == "__main__":
    key = jax.random.PRNGKey(0)
    kp, kt, kpar = jax.random.split(key, 3)
    prompts = jax.random.normal(kp, (B, L, D), jnp.float32)
    tokenized_prompts = jax.random.randint(kt, (B, L), 0, 1000, jnp.int32)
    params = init_params(kpar)

    out = text_encoder_forward(prompts, tokenized_prompts, params)
    out = jax.block_until_ready(out)

    ref = reference_forward(prompts, tokenized_prompts, params)
    assert out.shape == (B, E), out.shape
    err = float(jnp.max(jnp.abs(out - ref)))
    # kernel uses bf16 matmul operands / bf16 QuickGELU + approx softmax
    # reciprocal vs f32 reference
    assert jnp.allclose(out, ref, atol=2e-2, rtol=2e-2), f"max |err| = {err}"
    print("KERNEL_OK")
</pallas_src>

<mosaic_0001>
module attributes {stable_mosaic.version = 11 : i64} {
  func.func @fused_text_encoder_kernel(%arg0: i32, %arg1: memref<2xi32, #tpu.memory_space<smem>>, %arg2: memref<16x32xf32, #tpu.memory_space<vmem>>, %arg3: memref<8x32xf32, #tpu.memory_space<vmem>>, %arg4: memref<8x8xf32, #tpu.memory_space<vmem>>, %arg5: memref<1x32x96xbf16, #tpu.memory_space<vmem>>, %arg6: memref<1x32x32xbf16, #tpu.memory_space<vmem>>, %arg7: memref<1x32x128xbf16, #tpu.memory_space<vmem>>, %arg8: memref<1x128x32xbf16, #tpu.memory_space<vmem>>, %arg9: memref<2x1x32xf32, #tpu.memory_space<vmem>>, %arg10: memref<2x1x32xf32, #tpu.memory_space<vmem>>, %arg11: memref<2x1x96xf32, #tpu.memory_space<vmem>>, %arg12: memref<2x1x32xf32, #tpu.memory_space<vmem>>, %arg13: memref<2x1x32xf32, #tpu.memory_space<vmem>>, %arg14: memref<2x1x32xf32, #tpu.memory_space<vmem>>, %arg15: memref<2x1x128xf32, #tpu.memory_space<vmem>>, %arg16: memref<2x1x32xf32, #tpu.memory_space<vmem>>, %arg17: memref<1x32xf32, #tpu.memory_space<vmem>>, %arg18: memref<1x32xf32, #tpu.memory_space<vmem>>, %arg19: memref<32x32xbf16, #tpu.memory_space<vmem>>, %arg20: memref<2x32xf32, #tpu.memory_space<vmem>>, %arg21: memref<16x32xf32, #tpu.memory_space<vmem>>) attributes {dimension_semantics = [#tpu.dimension_semantics<arbitrary>], iteration_bounds = array<i64: 2>, scalar_prefetch = 1 : i64, scratch_operands = 1 : i64, tpu.core_type = #tpu.core_type<tc>, window_params = [{pipeline_mode = #tpu.pipeline_mode<synchronous>, transform_indices = @transform_0, window_bounds = array<i64: 16, 32>}, {pipeline_mode = #tpu.pipeline_mode<synchronous>, transform_indices = @transform_1, window_bounds = array<i64: 8, 32>}, {pipeline_mode = #tpu.pipeline_mode<synchronous>, transform_indices = @transform_2, window_bounds = array<i64: 8, 8>}, {transform_indices = @transform_3, window_bounds = array<i64: 1, 32, 96>}, {transform_indices = @transform_4, window_bounds = array<i64: 1, 32, 32>}, {transform_indices = @transform_5, window_bounds = array<i64: 1, 32, 128>}, {transform_indices = @transform_6, window_bounds = array<i64: 1, 128, 32>}, {pipeline_mode = #tpu.pipeline_mode<synchronous>, transform_indices = @transform_7, window_bounds = array<i64: 2, 1, 32>}, {pipeline_mode = #tpu.pipeline_mode<synchronous>, transform_indices = @transform_8, window_bounds = array<i64: 2, 1, 32>}, {pipeline_mode = #tpu.pipeline_mode<synchronous>, transform_indices = @transform_9, window_bounds = array<i64: 2, 1, 96>}, {pipeline_mode = #tpu.pipeline_mode<synchronous>, transform_indices = @transform_10, window_bounds = array<i64: 2, 1, 32>}, {pipeline_mode = #tpu.pipeline_mode<synchronous>, transform_indices = @transform_11, window_bounds = array<i64: 2, 1, 32>}, {pipeline_mode = #tpu.pipeline_mode<synchronous>, transform_indices = @transform_12, window_bounds = array<i64: 2, 1, 32>}, {pipeline_mode = #tpu.pipeline_mode<synchronous>, transform_indices = @transform_13, window_bounds = array<i64: 2, 1, 128>}, {pipeline_mode = #tpu.pipeline_mode<synchronous>, transform_indices = @transform_14, window_bounds = array<i64: 2, 1, 32>}, {pipeline_mode = #tpu.pipeline_mode<synchronous>, transform_indices = @transform_15, window_bounds = array<i64: 1, 32>}, {pipeline_mode = #tpu.pipeline_mode<synchronous>, transform_indices = @transform_16, window_bounds = array<i64: 1, 32>}, {pipeline_mode = #tpu.pipeline_mode<synchronous>, transform_indices = @transform_17, window_bounds = array<i64: 32, 32>}, {pipeline_mode = #tpu.pipeline_mode<synchronous>, transform_indices = @transform_18, window_bounds = array<i64: 2, 32>}]} {
    %c0_i32 = arith.constant 0 : i32
    %0 = arith.cmpi eq, %arg0, %c0_i32 : i32
    %1 = arith.extui %0 : i1 to i32
    %c0_i32_0 = arith.constant 0 : i32
    %2 = arith.cmpi ne, %1, %c0_i32_0 : i32
    scf.if %2 {
      %c0_90 = arith.constant 0 : index
      %c0_91 = arith.constant 0 : index
      %284 = vector.load %arg3[%c0_90, %c0_91] : memref<8x32xf32, #tpu.memory_space<vmem>>, vector<8x32xf32>
      %c0_92 = arith.constant 0 : index
      %c0_93 = arith.constant 0 : index
      %285 = vector.load %arg2[%c0_92, %c0_93] : memref<16x32xf32, #tpu.memory_space<vmem>>, vector<8x32xf32>
      %286 = arith.addf %285, %284 : vector<8x32xf32>
      %c0_94 = arith.constant 0 : index
      %c0_95 = arith.constant 0 : index
      %287 = vector.load %arg21[%c0_94, %c0_95] : memref<16x32xf32, #tpu.memory_space<vmem>>, vector<8x32xf32>
      tpu.vector_store %arg21[%c0_94, %c0_95], %286 {strides = array<i32>} : memref<16x32xf32, #tpu.memory_space<vmem>>, vector<8x32xf32>,
      %c8 = arith.constant 8 : index
      %c0_96 = arith.constant 0 : index
      %288 = vector.load %arg2[%c8, %c0_96] : memref<16x32xf32, #tpu.memory_space<vmem>>, vector<8x32xf32>
      %289 = arith.addf %288, %284 : vector<8x32xf32>
      %c8_97 = arith.constant 8 : index
      %c0_98 = arith.constant 0 : index
      %290 = vector.load %arg21[%c8_97, %c0_98] : memref<16x32xf32, #tpu.memory_space<vmem>>, vector<8x32xf32>
      tpu.vector_store %arg21[%c8_97, %c0_98], %289 {strides = array<i32>} : memref<16x32xf32, #tpu.memory_space<vmem>>, vector<8x32xf32>,
    } else {
    }
    %c0 = arith.constant 0 : index
    %c0_1 = arith.constant 0 : index
    %3 = vector.load %arg21[%c0, %c0_1] : memref<16x32xf32, #tpu.memory_space<vmem>>, vector<16x32xf32>
    %c0_2 = arith.constant 0 : index
    %c0_3 = arith.constant 0 : index
    %4 = vector.load %arg4[%c0_2, %c0_3] : memref<8x8xf32, #tpu.memory_space<vmem>>, vector<8x8xf32>
    %5 = arith.index_cast %arg0 : i32 to index
    %c0_4 = arith.constant 0 : index
    %c0_5 = arith.constant 0 : index
    %6 = vector.load %arg9[%5, %c0_4, %c0_5] : memref<2x1x32xf32, #tpu.memory_space<vmem>>, vector<1x1x32xf32>
    %7 = vector.shape_cast %6 : vector<1x1x32xf32> to vector<1x32xf32>
    %8 = arith.index_cast %arg0 : i32 to index
    %c0_6 = arith.constant 0 : index
    %c0_7 = arith.constant 0 : index
    %9 = vector.load %arg10[%8, %c0_6, %c0_7] : memref<2x1x32xf32, #tpu.memory_space<vmem>>, vector<1x1x32xf32>
    %10 = vector.shape_cast %9 : vector<1x1x32xf32> to vector<1x32xf32>
    %cst = arith.constant dense<0.000000e+00> : vector<16xf32>
    %11 = vector.multi_reduction <add>, %3, %cst [1] : vector<16x32xf32> to vector<16xf32>
    %12 = vector.shape_cast %11 : vector<16xf32> to vector<16x1xf32>
    %cst_8 = arith.constant 3.200000e+01 : f32
    %13 = vector.broadcast %cst_8 : f32 to vector<16x1xf32>
    %14 = arith.divf %12, %13 : vector<16x1xf32>
    %15 = vector.broadcast %14 : vector<16x1xf32> to vector<16x32xf32>
    %16 = arith.subf %3, %15 : vector<16x32xf32>
    %17 = arith.mulf %16, %16 : vector<16x32xf32>
    %cst_9 = arith.constant dense<0.000000e+00> : vector<16xf32>
    %18 = vector.multi_reduction <add>, %17, %cst_9 [1] : vector<16x32xf32> to vector<16xf32>
    %19 = vector.shape_cast %18 : vector<16xf32> to vector<16x1xf32>
    %cst_10 = arith.constant 3.200000e+01 : f32
    %20 = vector.broadcast %cst_10 : f32 to vector<16x1xf32>
    %21 = arith.divf %19, %20 : vector<16x1xf32>
    %22 = vector.broadcast %14 : vector<16x1xf32> to vector<16x32xf32>
    %23 = arith.subf %3, %22 : vector<16x32xf32>
    %cst_11 = arith.constant 9.99999974E-6 : f32
    %24 = vector.broadcast %cst_11 : f32 to vector<16x1xf32>
    %25 = arith.addf %21, %24 : vector<16x1xf32>
    %26 = math.rsqrt %25 : vector<16x1xf32>
    %27 = vector.broadcast %26 : vector<16x1xf32> to vector<16x32xf32>
    %28 = arith.mulf %23, %27 : vector<16x32xf32>
    %29 = vector.broadcast %7 : vector<1x32xf32> to vector<16x32xf32>
    %30 = arith.mulf %28, %29 : vector<16x32xf32>
    %31 = vector.broadcast %10 : vector<1x32xf32> to vector<16x32xf32>
    %32 = arith.addf %30, %31 : vector<16x32xf32>
    %33 = arith.truncf %32 : vector<16x32xf32> to vector<16x32xbf16>
    %c0_12 = arith.constant 0 : index
    %c0_13 = arith.constant 0 : index
    %c0_14 = arith.constant 0 : index
    %34 = vector.load %arg5[%c0_12, %c0_13, %c0_14] : memref<1x32x96xbf16, #tpu.memory_space<vmem>>, vector<1x32x96xbf16>
    %35 = vector.shape_cast %34 : vector<1x32x96xbf16> to vector<32x96xbf16>
    %cst_15 = arith.constant dense<0.000000e+00> : vector<16x96xf32>
    %36 = tpu.matmul %33, %35, %cst_15 {dimension_numbers = #tpu.dot_dimension_numbers<[1], [0], [0], [1], [0, 0, 1, 1], [], []>} : vector<16x32xbf16>, vector<32x96xbf16>, vector<16x96xf32> -> vector<16x96xf32>
    %37 = arith.index_cast %arg0 : i32 to index
    %c0_16 = arith.constant 0 : index
    %c0_17 = arith.constant 0 : index
    %38 = vector.load %arg11[%37, %c0_16, %c0_17] : memref<2x1x96xf32, #tpu.memory_space<vmem>>, vector<1x1x96xf32>
    %39 = vector.shape_cast %38 : vector<1x1x96xf32> to vector<1x96xf32>
    %40 = vector.broadcast %39 : vector<1x96xf32> to vector<16x96xf32>
    %41 = arith.addf %36, %40 : vector<16x96xf32>
    %42 = vector.extract_strided_slice %41 {offsets = [0, 0], sizes = [16, 32], strides = [1, 1]} : vector<16x96xf32> to vector<16x32xf32>
    %cst_18 = arith.constant 0.353553385 : f32
    %43 = vector.broadcast %cst_18 : f32 to vector<16x32xf32>
    %44 = arith.mulf %42, %43 : vector<16x32xf32>
    %45 = vector.extract_strided_slice %41 {offsets = [0, 32], sizes = [16, 32], strides = [1, 1]} : vector<16x96xf32> to vector<16x32xf32>
    %46 = vector.extract_strided_slice %41 {offsets = [0, 64], sizes = [16, 32], strides = [1, 1]} : vector<16x96xf32> to vector<16x32xf32>
    %c0_19 = arith.constant 0 : index
    %c0_20 = arith.constant 0 : index
    %c0_21 = arith.constant 0 : index
    %47 = vector.load %arg6[%c0_19, %c0_20, %c0_21] : memref<1x32x32xbf16, #tpu.memory_space<vmem>>, vector<1x32x32xbf16>
    %48 = vector.shape_cast %47 : vector<1x32x32xbf16> to vector<32x32xbf16>
    %49 = arith.index_cast %arg0 : i32 to index
    %c0_22 = arith.constant 0 : index
    %c0_23 = arith.constant 0 : index
    %50 = vector.load %arg12[%49, %c0_22, %c0_23] : memref<2x1x32xf32, #tpu.memory_space<vmem>>, vector<1x1x32xf32>
    %51 = vector.shape_cast %50 : vector<1x1x32xf32> to vector<1x32xf32>
    %52 = vector.extract_strided_slice %44 {offsets = [0, 0], sizes = [8, 32], strides = [1, 1]} : vector<16x32xf32> to vector<8x32xf32>
    %53 = vector.extract_strided_slice %45 {offsets = [0, 0], sizes = [8, 32], strides = [1, 1]} : vector<16x32xf32> to vector<8x32xf32>
    %54 = vector.extract_strided_slice %46 {offsets = [0, 0], sizes = [8, 32], strides = [1, 1]} : vector<16x32xf32> to vector<8x32xf32>
    %55 = vector.extract_strided_slice %52 {offsets = [0, 0], sizes = [8, 8], strides = [1, 1]} : vector<8x32xf32> to vector<8x8xf32>
    %56 = vector.extract_strided_slice %53 {offsets = [0, 0], sizes = [8, 8], strides = [1, 1]} : vector<8x32xf32> to vector<8x8xf32>
    "tpu.trace_start"() <{level = 10 : i32, message = "qd,kd->qk"}> : () -> ()
    %cst_24 = arith.constant dense<0.000000e+00> : vector<8x8xf32>
    %57 = tpu.matmul %55, %56, %cst_24 {dimension_numbers = #tpu.dot_dimension_numbers<[1], [1], [0], [0], [0, 0, 1, 0], [], []>} : vector<8x8xf32>, vector<8x8xf32>, vector<8x8xf32> -> vector<8x8xf32>
    "tpu.trace_stop"() : () -> ()
    %58 = arith.addf %57, %4 : vector<8x8xf32>
    %cst_25 = arith.constant dense<0xFF800000> : vector<8xf32>
    %59 = vector.multi_reduction <maximumf>, %58, %cst_25 [1] : vector<8x8xf32> to vector<8xf32>
    %60 = vector.shape_cast %59 : vector<8xf32> to vector<8x1xf32>
    %61 = vector.broadcast %60 : vector<8x1xf32> to vector<8x8xf32>
    %62 = arith.subf %58, %61 : vector<8x8xf32>
    %63 = math.exp %62 : vector<8x8xf32>
    %cst_26 = arith.constant dense<0.000000e+00> : vector<8xf32>
    %64 = vector.multi_reduction <add>, %63, %cst_26 [1] : vector<8x8xf32> to vector<8xf32>
    %65 = vector.shape_cast %64 : vector<8xf32> to vector<8x1xf32>
    %66 = tpu.reciprocal %65 {approx = true} : vector<8x1xf32> -> vector<8x1xf32>
    %67 = vector.broadcast %66 : vector<8x1xf32> to vector<8x8xf32>
    %68 = arith.mulf %63, %67 : vector<8x8xf32>
    %69 = vector.extract_strided_slice %54 {offsets = [0, 0], sizes = [8, 8], strides = [1, 1]} : vector<8x32xf32> to vector<8x8xf32>
    %cst_27 = arith.constant dense<0.000000e+00> : vector<8x8xf32>
    %70 = tpu.matmul %68, %69, %cst_27 {dimension_numbers = #tpu.dot_dimension_numbers<[1], [0], [0], [1], [0, 0, 1, 1], [], []>} : vector<8x8xf32>, vector<8x8xf32>, vector<8x8xf32> -> vector<8x8xf32>
    %71 = arith.truncf %70 : vector<8x8xf32> to vector<8x8xbf16>
    %72 = vector.extract_strided_slice %48 {offsets = [0, 0], sizes = [8, 32], strides = [1, 1]} : vector<32x32xbf16> to vector<8x32xbf16>
    %cst_28 = arith.constant dense<0.000000e+00> : vector<8x32xf32>
    %73 = tpu.matmul %71, %72, %cst_28 {dimension_numbers = #tpu.dot_dimension_numbers<[1], [0], [0], [1], [0, 0, 1, 1], [], []>} : vector<8x8xbf16>, vector<8x32xbf16>, vector<8x32xf32> -> vector<8x32xf32>
    %74 = vector.extract_strided_slice %52 {offsets = [0, 8], sizes = [8, 8], strides = [1, 1]} : vector<8x32xf32> to vector<8x8xf32>
    %75 = vector.extract_strided_slice %53 {offsets = [0, 8], sizes = [8, 8], strides = [1, 1]} : vector<8x32xf32> to vector<8x8xf32>
    "tpu.trace_start"() <{level = 10 : i32, message = "qd,kd->qk"}> : () -> ()
    %cst_29 = arith.constant dense<0.000000e+00> : vector<8x8xf32>
    %76 = tpu.matmul %74, %75, %cst_29 {dimension_numbers = #tpu.dot_dimension_numbers<[1], [1], [0], [0], [0, 0, 1, 0], [], []>} : vector<8x8xf32>, vector<8x8xf32>, vector<8x8xf32> -> vector<8x8xf32>
    "tpu.trace_stop"() : () -> ()
    %77 = arith.addf %76, %4 : vector<8x8xf32>
    %cst_30 = arith.constant dense<0xFF800000> : vector<8xf32>
    %78 = vector.multi_reduction <maximumf>, %77, %cst_30 [1] : vector<8x8xf32> to vector<8xf32>
    %79 = vector.shape_cast %78 : vector<8xf32> to vector<8x1xf32>
    %80 = vector.broadcast %79 : vector<8x1xf32> to vector<8x8xf32>
    %81 = arith.subf %77, %80 : vector<8x8xf32>
    %82 = math.exp %81 : vector<8x8xf32>
    %cst_31 = arith.constant dense<0.000000e+00> : vector<8xf32>
    %83 = vector.multi_reduction <add>, %82, %cst_31 [1] : vector<8x8xf32> to vector<8xf32>
    %84 = vector.shape_cast %83 : vector<8xf32> to vector<8x1xf32>
    %85 = tpu.reciprocal %84 {approx = true} : vector<8x1xf32> -> vector<8x1xf32>
    %86 = vector.broadcast %85 : vector<8x1xf32> to vector<8x8xf32>
    %87 = arith.mulf %82, %86 : vector<8x8xf32>
    %88 = vector.extract_strided_slice %54 {offsets = [0, 8], sizes = [8, 8], strides = [1, 1]} : vector<8x32xf32> to vector<8x8xf32>
    %cst_32 = arith.constant dense<0.000000e+00> : vector<8x8xf32>
    %89 = tpu.matmul %87, %88, %cst_32 {dimension_numbers = #tpu.dot_dimension_numbers<[1], [0], [0], [1], [0, 0, 1, 1], [], []>} : vector<8x8xf32>, vector<8x8xf32>, vector<8x8xf32> -> vector<8x8xf32>
    %90 = arith.truncf %89 : vector<8x8xf32> to vector<8x8xbf16>
    %91 = vector.extract_strided_slice %48 {offsets = [8, 0], sizes = [8, 32], strides = [1, 1]} : vector<32x32xbf16> to vector<8x32xbf16>
    %cst_33 = arith.constant dense<0.000000e+00> : vector<8x32xf32>
    %92 = tpu.matmul %90, %91, %cst_33 {dimension_numbers = #tpu.dot_dimension_numbers<[1], [0], [0], [1], [0, 0, 1, 1], [], []>} : vector<8x8xbf16>, vector<8x32xbf16>, vector<8x32xf32> -> vector<8x32xf32>
    %93 = arith.addf %73, %92 : vector<8x32xf32>
    %94 = vector.extract_strided_slice %52 {offsets = [0, 16], sizes = [8, 8], strides = [1, 1]} : vector<8x32xf32> to vector<8x8xf32>
    %95 = vector.extract_strided_slice %53 {offsets = [0, 16], sizes = [8, 8], strides = [1, 1]} : vector<8x32xf32> to vector<8x8xf32>
    "tpu.trace_start"() <{level = 10 : i32, message = "qd,kd->qk"}> : () -> ()
    %cst_34 = arith.constant dense<0.000000e+00> : vector<8x8xf32>
    %96 = tpu.matmul %94, %95, %cst_34 {dimension_numbers = #tpu.dot_dimension_numbers<[1], [1], [0], [0], [0, 0, 1, 0], [], []>} : vector<8x8xf32>, vector<8x8xf32>, vector<8x8xf32> -> vector<8x8xf32>
    "tpu.trace_stop"() : () -> ()
    %97 = arith.addf %96, %4 : vector<8x8xf32>
    %cst_35 = arith.constant dense<0xFF800000> : vector<8xf32>
    %98 = vector.multi_reduction <maximumf>, %97, %cst_35 [1] : vector<8x8xf32> to vector<8xf32>
    %99 = vector.shape_cast %98 : vector<8xf32> to vector<8x1xf32>
    %100 = vector.broadcast %99 : vector<8x1xf32> to vector<8x8xf32>
    %101 = arith.subf %97, %100 : vector<8x8xf32>
    %102 = math.exp %101 : vector<8x8xf32>
    %cst_36 = arith.constant dense<0.000000e+00> : vector<8xf32>
    %103 = vector.multi_reduction <add>, %102, %cst_36 [1] : vector<8x8xf32> to vector<8xf32>
    %104 = vector.shape_cast %103 : vector<8xf32> to vector<8x1xf32>
    %105 = tpu.reciprocal %104 {approx = true} : vector<8x1xf32> -> vector<8x1xf32>
    %106 = vector.broadcast %105 : vector<8x1xf32> to vector<8x8xf32>
    %107 = arith.mulf %102, %106 : vector<8x8xf32>
    %108 = vector.extract_strided_slice %54 {offsets = [0, 16], sizes = [8, 8], strides = [1, 1]} : vector<8x32xf32> to vector<8x8xf32>
    %cst_37 = arith.constant dense<0.000000e+00> : vector<8x8xf32>
    %109 = tpu.matmul %107, %108, %cst_37 {dimension_numbers = #tpu.dot_dimension_numbers<[1], [0], [0], [1], [0, 0, 1, 1], [], []>} : vector<8x8xf32>, vector<8x8xf32>, vector<8x8xf32> -> vector<8x8xf32>
    %110 = arith.truncf %109 : vector<8x8xf32> to vector<8x8xbf16>
    %111 = vector.extract_strided_slice %48 {offsets = [16, 0], sizes = [8, 32], strides = [1, 1]} : vector<32x32xbf16> to vector<8x32xbf16>
    %cst_38 = arith.constant dense<0.000000e+00> : vector<8x32xf32>
    %112 = tpu.matmul %110, %111, %cst_38 {dimension_numbers = #tpu.dot_dimension_numbers<[1], [0], [0], [1], [0, 0, 1, 1], [], []>} : vector<8x8xbf16>, vector<8x32xbf16>, vector<8x32xf32> -> vector<8x32xf32>
    %113 = arith.addf %93, %112 : vector<8x32xf32>
    %114 = vector.extract_strided_slice %52 {offsets = [0, 24], sizes = [8, 8], strides = [1, 1]} : vector<8x32xf32> to vector<8x8xf32>
    %115 = vector.extract_strided_slice %53 {offsets = [0, 24], sizes = [8, 8], strides = [1, 1]} : vector<8x32xf32> to vector<8x8xf32>
    "tpu.trace_start"() <{level = 10 : i32, message = "qd,kd->qk"}> : () -> ()
    %cst_39 = arith.constant dense<0.000000e+00> : vector<8x8xf32>
    %116 = tpu.matmul %114, %115, %cst_39 {dimension_numbers = #tpu.dot_dimension_numbers<[1], [1], [0], [0], [0, 0, 1, 0], [], []>} : vector<8x8xf32>, vector<8x8xf32>, vector<8x8xf32> -> vector<8x8xf32>
    "tpu.trace_stop"() : () -> ()
    %117 = arith.addf %116, %4 : vector<8x8xf32>
    %cst_40 = arith.constant dense<0xFF800000> : vector<8xf32>
    %118 = vector.multi_reduction <maximumf>, %117, %cst_40 [1] : vector<8x8xf32> to vector<8xf32>
    %119 = vector.shape_cast %118 : vector<8xf32> to vector<8x1xf32>
    %120 = vector.broadcast %119 : vector<8x1xf32> to vector<8x8xf32>
    %121 = arith.subf %117, %120 : vector<8x8xf32>
    %122 = math.exp %121 : vector<8x8xf32>
    %cst_41 = arith.constant dense<0.000000e+00> : vector<8xf32>
    %123 = vector.multi_reduction <add>, %122, %cst_41 [1] : vector<8x8xf32> to vector<8xf32>
    %124 = vector.shape_cast %123 : vector<8xf32> to vector<8x1xf32>
    %125 = tpu.reciprocal %124 {approx = true} : vector<8x1xf32> -> vector<8x1xf32>
    %126 = vector.broadcast %125 : vector<8x1xf32> to vector<8x8xf32>
    %127 = arith.mulf %122, %126 : vector<8x8xf32>
    %128 = vector.extract_strided_slice %54 {offsets = [0, 24], sizes = [8, 8], strides = [1, 1]} : vector<8x32xf32> to vector<8x8xf32>
    %cst_42 = arith.constant dense<0.000000e+00> : vector<8x8xf32>
    %129 = tpu.matmul %127, %128, %cst_42 {dimension_numbers = #tpu.dot_dimension_numbers<[1], [0], [0], [1], [0, 0, 1, 1], [], []>} : vector<8x8xf32>, vector<8x8xf32>, vector<8x8xf32> -> vector<8x8xf32>
    %130 = arith.truncf %129 : vector<8x8xf32> to vector<8x8xbf16>
    %131 = vector.extract_strided_slice %48 {offsets = [24, 0], sizes = [8, 32], strides = [1, 1]} : vector<32x32xbf16> to vector<8x32xbf16>
    %cst_43 = arith.constant dense<0.000000e+00> : vector<8x32xf32>
    %132 = tpu.matmul %130, %131, %cst_43 {dimension_numbers = #tpu.dot_dimension_numbers<[1], [0], [0], [1], [0, 0, 1, 1], [], []>} : vector<8x8xbf16>, vector<8x32xbf16>, vector<8x32xf32> -> vector<8x32xf32>
    %133 = arith.addf %113, %132 : vector<8x32xf32>
    %134 = vector.extract_strided_slice %3 {offsets = [0, 0], sizes = [8, 32], strides = [1, 1]} : vector<16x32xf32> to vector<8x32xf32>
    %135 = arith.addf %134, %133 : vector<8x32xf32>
    %136 = vector.broadcast %51 : vector<1x32xf32> to vector<8x32xf32>
    %137 = arith.addf %135, %136 : vector<8x32xf32>
    %138 = vector.extract_strided_slice %44 {offsets = [8, 0], sizes = [8, 32], strides = [1, 1]} : vector<16x32xf32> to vector<8x32xf32>
    %139 = vector.extract_strided_slice %45 {offsets = [8, 0], sizes = [8, 32], strides = [1, 1]} : vector<16x32xf32> to vector<8x32xf32>
    %140 = vector.extract_strided_slice %46 {offsets = [8, 0], sizes = [8, 32], strides = [1, 1]} : vector<16x32xf32> to vector<8x32xf32>
    %141 = vector.extract_strided_slice %138 {offsets = [0, 0], sizes = [8, 8], strides = [1, 1]} : vector<8x32xf32> to vector<8x8xf32>
    %142 = vector.extract_strided_slice %139 {offsets = [0, 0], sizes = [8, 8], strides = [1, 1]} : vector<8x32xf32> to vector<8x8xf32>
    "tpu.trace_start"() <{level = 10 : i32, message = "qd,kd->qk"}> : () -> ()
    %cst_44 = arith.constant dense<0.000000e+00> : vector<8x8xf32>
    %143 = tpu.matmul %141, %142, %cst_44 {dimension_numbers = #tpu.dot_dimension_numbers<[1], [1], [0], [0], [0, 0, 1, 0], [], []>} : vector<8x8xf32>, vector<8x8xf32>, vector<8x8xf32> -> vector<8x8xf32>
    "tpu.trace_stop"() : () -> ()
    %144 = arith.addf %143, %4 : vector<8x8xf32>
    %cst_45 = arith.constant dense<0xFF800000> : vector<8xf32>
    %145 = vector.multi_reduction <maximumf>, %144, %cst_45 [1] : vector<8x8xf32> to vector<8xf32>
    %146 = vector.shape_cast %145 : vector<8xf32> to vector<8x1xf32>
    %147 = vector.broadcast %146 : vector<8x1xf32> to vector<8x8xf32>
    %148 = arith.subf %144, %147 : vector<8x8xf32>
    %149 = math.exp %148 : vector<8x8xf32>
    %cst_46 = arith.constant dense<0.000000e+00> : vector<8xf32>
    %150 = vector.multi_reduction <add>, %149, %cst_46 [1] : vector<8x8xf32> to vector<8xf32>
    %151 = vector.shape_cast %150 : vector<8xf32> to vector<8x1xf32>
    %152 = tpu.reciprocal %151 {approx = true} : vector<8x1xf32> -> vector<8x1xf32>
    %153 = vector.broadcast %152 : vector<8x1xf32> to vector<8x8xf32>
    %154 = arith.mulf %149, %153 : vector<8x8xf32>
    %155 = vector.extract_strided_slice %140 {offsets = [0, 0], sizes = [8, 8], strides = [1, 1]} : vector<8x32xf32> to vector<8x8xf32>
    %cst_47 = arith.constant dense<0.000000e+00> : vector<8x8xf32>
    %156 = tpu.matmul %154, %155, %cst_47 {dimension_numbers = #tpu.dot_dimension_numbers<[1], [0], [0], [1], [0, 0, 1, 1], [], []>} : vector<8x8xf32>, vector<8x8xf32>, vector<8x8xf32> -> vector<8x8xf32>
    %157 = arith.truncf %156 : vector<8x8xf32> to vector<8x8xbf16>
    %158 = vector.extract_strided_slice %48 {offsets = [0, 0], sizes = [8, 32], strides = [1, 1]} : vector<32x32xbf16> to vector<8x32xbf16>
    %cst_48 = arith.constant dense<0.000000e+00> : vector<8x32xf32>
    %159 = tpu.matmul %157, %158, %cst_48 {dimension_numbers = #tpu.dot_dimension_numbers<[1], [0], [0], [1], [0, 0, 1, 1], [], []>} : vector<8x8xbf16>, vector<8x32xbf16>, vector<8x32xf32> -> vector<8x32xf32>
    %160 = vector.extract_strided_slice %138 {offsets = [0, 8], sizes = [8, 8], strides = [1, 1]} : vector<8x32xf32> to vector<8x8xf32>
    %161 = vector.extract_strided_slice %139 {offsets = [0, 8], sizes = [8, 8], strides = [1, 1]} : vector<8x32xf32> to vector<8x8xf32>
    "tpu.trace_start"() <{level = 10 : i32, message = "qd,kd->qk"}> : () -> ()
    %cst_49 = arith.constant dense<0.000000e+00> : vector<8x8xf32>
    %162 = tpu.matmul %160, %161, %cst_49 {dimension_numbers = #tpu.dot_dimension_numbers<[1], [1], [0], [0], [0, 0, 1, 0], [], []>} : vector<8x8xf32>, vector<8x8xf32>, vector<8x8xf32> -> vector<8x8xf32>
    "tpu.trace_stop"() : () -> ()
    %163 = arith.addf %162, %4 : vector<8x8xf32>
    %cst_50 = arith.constant dense<0xFF800000> : vector<8xf32>
    %164 = vector.multi_reduction <maximumf>, %163, %cst_50 [1] : vector<8x8xf32> to vector<8xf32>
    %165 = vector.shape_cast %164 : vector<8xf32> to vector<8x1xf32>
    %166 = vector.broadcast %165 : vector<8x1xf32> to vector<8x8xf32>
    %167 = arith.subf %163, %166 : vector<8x8xf32>
    %168 = math.exp %167 : vector<8x8xf32>
    %cst_51 = arith.constant dense<0.000000e+00> : vector<8xf32>
    %169 = vector.multi_reduction <add>, %168, %cst_51 [1] : vector<8x8xf32> to vector<8xf32>
    %170 = vector.shape_cast %169 : vector<8xf32> to vector<8x1xf32>
    %171 = tpu.reciprocal %170 {approx = true} : vector<8x1xf32> -> vector<8x1xf32>
    %172 = vector.broadcast %171 : vector<8x1xf32> to vector<8x8xf32>
    %173 = arith.mulf %168, %172 : vector<8x8xf32>
    %174 = vector.extract_strided_slice %140 {offsets = [0, 8], sizes = [8, 8], strides = [1, 1]} : vector<8x32xf32> to vector<8x8xf32>
    %cst_52 = arith.constant dense<0.000000e+00> : vector<8x8xf32>
    %175 = tpu.matmul %173, %174, %cst_52 {dimension_numbers = #tpu.dot_dimension_numbers<[1], [0], [0], [1], [0, 0, 1, 1], [], []>} : vector<8x8xf32>, vector<8x8xf32>, vector<8x8xf32> -> vector<8x8xf32>
    %176 = arith.truncf %175 : vector<8x8xf32> to vector<8x8xbf16>
    %177 = vector.extract_strided_slice %48 {offsets = [8, 0], sizes = [8, 32], strides = [1, 1]} : vector<32x32xbf16> to vector<8x32xbf16>
    %cst_53 = arith.constant dense<0.000000e+00> : vector<8x32xf32>
    %178 = tpu.matmul %176, %177, %cst_53 {dimension_numbers = #tpu.dot_dimension_numbers<[1], [0], [0], [1], [0, 0, 1, 1], [], []>} : vector<8x8xbf16>, vector<8x32xbf16>, vector<8x32xf32> -> vector<8x32xf32>
    %179 = arith.addf %159, %178 : vector<8x32xf32>
    %180 = vector.extract_strided_slice %138 {offsets = [0, 16], sizes = [8, 8], strides = [1, 1]} : vector<8x32xf32> to vector<8x8xf32>
    %181 = vector.extract_strided_slice %139 {offsets = [0, 16], sizes = [8, 8], strides = [1, 1]} : vector<8x32xf32> to vector<8x8xf32>
    "tpu.trace_start"() <{level = 10 : i32, message = "qd,kd->qk"}> : () -> ()
    %cst_54 = arith.constant dense<0.000000e+00> : vector<8x8xf32>
    %182 = tpu.matmul %180, %181, %cst_54 {dimension_numbers = #tpu.dot_dimension_numbers<[1], [1], [0], [0], [0, 0, 1, 0], [], []>} : vector<8x8xf32>, vector<8x8xf32>, vector<8x8xf32> -> vector<8x8xf32>
    "tpu.trace_stop"() : () -> ()
    %183 = arith.addf %182, %4 : vector<8x8xf32>
    %cst_55 = arith.constant dense<0xFF800000> : vector<8xf32>
    %184 = vector.multi_reduction <maximumf>, %183, %cst_55 [1] : vector<8x8xf32> to vector<8xf32>
    %185 = vector.shape_cast %184 : vector<8xf32> to vector<8x1xf32>
    %186 = vector.broadcast %185 : vector<8x1xf32> to vector<8x8xf32>
    %187 = arith.subf %183, %186 : vector<8x8xf32>
    %188 = math.exp %187 : vector<8x8xf32>
    %cst_56 = arith.constant dense<0.000000e+00> : vector<8xf32>
    %189 = vector.multi_reduction <add>, %188, %cst_56 [1] : vector<8x8xf32> to vector<8xf32>
    %190 = vector.shape_cast %189 : vector<8xf32> to vector<8x1xf32>
    %191 = tpu.reciprocal %190 {approx = true} : vector<8x1xf32> -> vector<8x1xf32>
    %192 = vector.broadcast %191 : vector<8x1xf32> to vector<8x8xf32>
    %193 = arith.mulf %188, %192 : vector<8x8xf32>
    %194 = vector.extract_strided_slice %140 {offsets = [0, 16], sizes = [8, 8], strides = [1, 1]} : vector<8x32xf32> to vector<8x8xf32>
    %cst_57 = arith.constant dense<0.000000e+00> : vector<8x8xf32>
    %195 = tpu.matmul %193, %194, %cst_57 {dimension_numbers = #tpu.dot_dimension_numbers<[1], [0], [0], [1], [0, 0, 1, 1], [], []>} : vector<8x8xf32>, vector<8x8xf32>, vector<8x8xf32> -> vector<8x8xf32>
    %196 = arith.truncf %195 : vector<8x8xf32> to vector<8x8xbf16>
    %197 = vector.extract_strided_slice %48 {offsets = [16, 0], sizes = [8, 32], strides = [1, 1]} : vector<32x32xbf16> to vector<8x32xbf16>
    %cst_58 = arith.constant dense<0.000000e+00> : vector<8x32xf32>
    %198 = tpu.matmul %196, %197, %cst_58 {dimension_numbers = #tpu.dot_dimension_numbers<[1], [0], [0], [1], [0, 0, 1, 1], [], []>} : vector<8x8xbf16>, vector<8x32xbf16>, vector<8x32xf32> -> vector<8x32xf32>
    %199 = arith.addf %179, %198 : vector<8x32xf32>
    %200 = vector.extract_strided_slice %138 {offsets = [0, 24], sizes = [8, 8], strides = [1, 1]} : vector<8x32xf32> to vector<8x8xf32>
    %201 = vector.extract_strided_slice %139 {offsets = [0, 24], sizes = [8, 8], strides = [1, 1]} : vector<8x32xf32> to vector<8x8xf32>
    "tpu.trace_start"() <{level = 10 : i32, message = "qd,kd->qk"}> : () -> ()
    %cst_59 = arith.constant dense<0.000000e+00> : vector<8x8xf32>
    %202 = tpu.matmul %200, %201, %cst_59 {dimension_numbers = #tpu.dot_dimension_numbers<[1], [1], [0], [0], [0, 0, 1, 0], [], []>} : vector<8x8xf32>, vector<8x8xf32>, vector<8x8xf32> -> vector<8x8xf32>
    "tpu.trace_stop"() : () -> ()
    %203 = arith.addf %202, %4 : vector<8x8xf32>
    %cst_60 = arith.constant dense<0xFF800000> : vector<8xf32>
    %204 = vector.multi_reduction <maximumf>, %203, %cst_60 [1] : vector<8x8xf32> to vector<8xf32>
    %205 = vector.shape_cast %204 : vector<8xf32> to vector<8x1xf32>
    %206 = vector.broadcast %205 : vector<8x1xf32> to vector<8x8xf32>
    %207 = arith.subf %203, %206 : vector<8x8xf32>
    %208 = math.exp %207 : vector<8x8xf32>
    %cst_61 = arith.constant dense<0.000000e+00> : vector<8xf32>
    %209 = vector.multi_reduction <add>, %208, %cst_61 [1] : vector<8x8xf32> to vector<8xf32>
    %210 = vector.shape_cast %209 : vector<8xf32> to vector<8x1xf32>
    %211 = tpu.reciprocal %210 {approx = true} : vector<8x1xf32> -> vector<8x1xf32>
    %212 = vector.broadcast %211 : vector<8x1xf32> to vector<8x8xf32>
    %213 = arith.mulf %208, %212 : vector<8x8xf32>
    %214 = vector.extract_strided_slice %140 {offsets = [0, 24], sizes = [8, 8], strides = [1, 1]} : vector<8x32xf32> to vector<8x8xf32>
    %cst_62 = arith.constant dense<0.000000e+00> : vector<8x8xf32>
    %215 = tpu.matmul %213, %214, %cst_62 {dimension_numbers = #tpu.dot_dimension_numbers<[1], [0], [0], [1], [0, 0, 1, 1], [], []>} : vector<8x8xf32>, vector<8x8xf32>, vector<8x8xf32> -> vector<8x8xf32>
    %216 = arith.truncf %215 : vector<8x8xf32> to vector<8x8xbf16>
    %217 = vector.extract_strided_slice %48 {offsets = [24, 0], sizes = [8, 32], strides = [1, 1]} : vector<32x32xbf16> to vector<8x32xbf16>
    %cst_63 = arith.constant dense<0.000000e+00> : vector<8x32xf32>
    %218 = tpu.matmul %216, %217, %cst_63 {dimension_numbers = #tpu.dot_dimension_numbers<[1], [0], [0], [1], [0, 0, 1, 1], [], []>} : vector<8x8xbf16>, vector<8x32xbf16>, vector<8x32xf32> -> vector<8x32xf32>
    %219 = arith.addf %199, %218 : vector<8x32xf32>
    %220 = vector.extract_strided_slice %3 {offsets = [8, 0], sizes = [8, 32], strides = [1, 1]} : vector<16x32xf32> to vector<8x32xf32>
    %221 = arith.addf %220, %219 : vector<8x32xf32>
    %222 = vector.broadcast %51 : vector<1x32xf32> to vector<8x32xf32>
    %223 = arith.addf %221, %222 : vector<8x32xf32>
    %224 = tpu.concatenate %137, %223 in 0 : vector<8x32xf32>, vector<8x32xf32> -> vector<16x32xf32>
    %225 = arith.index_cast %arg0 : i32 to index
    %c0_64 = arith.constant 0 : index
    %c0_65 = arith.constant 0 : index
    %226 = vector.load %arg13[%225, %c0_64, %c0_65] : memref<2x1x32xf32, #tpu.memory_space<vmem>>, vector<1x1x32xf32>
    %227 = vector.shape_cast %226 : vector<1x1x32xf32> to vector<1x32xf32>
    %228 = arith.index_cast %arg0 : i32 to index
    %c0_66 = arith.constant 0 : index
    %c0_67 = arith.constant 0 : index
    %229 = vector.load %arg14[%228, %c0_66, %c0_67] : memref<2x1x32xf32, #tpu.memory_space<vmem>>, vector<1x1x32xf32>
    %230 = vector.shape_cast %229 : vector<1x1x32xf32> to vector<1x32xf32>
    %cst_68 = arith.constant dense<0.000000e+00> : vector<16xf32>
    %231 = vector.multi_reduction <add>, %224, %cst_68 [1] : vector<16x32xf32> to vector<16xf32>
    %232 = vector.shape_cast %231 : vector<16xf32> to vector<16x1xf32>
    %cst_69 = arith.constant 3.200000e+01 : f32
    %233 = vector.broadcast %cst_69 : f32 to vector<16x1xf32>
    %234 = arith.divf %232, %233 : vector<16x1xf32>
    %235 = vector.broadcast %234 : vector<16x1xf32> to vector<16x32xf32>
    %236 = arith.subf %224, %235 : vector<16x32xf32>
    %237 = arith.mulf %236, %236 : vector<16x32xf32>
    %cst_70 = arith.constant dense<0.000000e+00> : vector<16xf32>
    %238 = vector.multi_reduction <add>, %237, %cst_70 [1] : vector<16x32xf32> to vector<16xf32>
    %239 = vector.shape_cast %238 : vector<16xf32> to vector<16x1xf32>
    %cst_71 = arith.constant 3.200000e+01 : f32
    %240 = vector.broadcast %cst_71 : f32 to vector<16x1xf32>
    %241 = arith.divf %239, %240 : vector<16x1xf32>
    %242 = vector.broadcast %234 : vector<16x1xf32> to vector<16x32xf32>
    %243 = arith.subf %224, %242 : vector<16x32xf32>
    %cst_72 = arith.constant 9.99999974E-6 : f32
    %244 = vector.broadcast %cst_72 : f32 to vector<16x1xf32>
    %245 = arith.addf %241, %244 : vector<16x1xf32>
    %246 = math.rsqrt %245 : vector<16x1xf32>
    %247 = vector.broadcast %246 : vector<16x1xf32> to vector<16x32xf32>
    %248 = arith.mulf %243, %247 : vector<16x32xf32>
    %249 = vector.broadcast %227 : vector<1x32xf32> to vector<16x32xf32>
    %250 = arith.mulf %248, %249 : vector<16x32xf32>
    %251 = vector.broadcast %230 : vector<1x32xf32> to vector<16x32xf32>
    %252 = arith.addf %250, %251 : vector<16x32xf32>
    %253 = arith.truncf %252 : vector<16x32xf32> to vector<16x32xbf16>
    %c0_73 = arith.constant 0 : index
    %c0_74 = arith.constant 0 : index
    %c0_75 = arith.constant 0 : index
    %254 = vector.load %arg7[%c0_73, %c0_74, %c0_75] : memref<1x32x128xbf16, #tpu.memory_space<vmem>>, vector<1x32x128xbf16>
    %255 = vector.shape_cast %254 : vector<1x32x128xbf16> to vector<32x128xbf16>
    %cst_76 = arith.constant dense<0.000000e+00> : vector<16x128xf32>
    %256 = tpu.matmul %253, %255, %cst_76 {dimension_numbers = #tpu.dot_dimension_numbers<[1], [0], [0], [1], [0, 0, 1, 1], [], []>} : vector<16x32xbf16>, vector<32x128xbf16>, vector<16x128xf32> -> vector<16x128xf32>
    %257 = arith.index_cast %arg0 : i32 to index
    %c0_77 = arith.constant 0 : index
    %c0_78 = arith.constant 0 : index
    %258 = vector.load %arg15[%257, %c0_77, %c0_78] : memref<2x1x128xf32, #tpu.memory_space<vmem>>, vector<1x1x128xf32>
    %259 = vector.shape_cast %258 : vector<1x1x128xf32> to vector<1x128xf32>
    %260 = vector.broadcast %259 : vector<1x128xf32> to vector<16x128xf32>
    %261 = arith.addf %256, %260 : vector<16x128xf32>
    %262 = arith.truncf %261 : vector<16x128xf32> to vector<16x128xbf16>
    %cst_79 = arith.constant 1.703130e+00 : bf16
    %263 = vector.broadcast %cst_79 : bf16 to vector<16x128xbf16>
    %264 = arith.mulf %262, %263 : vector<16x128xbf16>
    %265 = arith.negf %264 : vector<16x128xbf16>
    %266 = math.exp %265 : vector<16x128xbf16>
    %cst_80 = arith.constant 1.000000e+00 : bf16
    %267 = vector.broadcast %cst_80 : bf16 to vector<16x128xbf16>
    %268 = arith.addf %267, %266 : vector<16x128xbf16>
    %269 = arith.divf %267, %268 : vector<16x128xbf16>
    %270 = arith.mulf %262, %269 : vector<16x128xbf16>
    %c0_81 = arith.constant 0 : index
    %c0_82 = arith.constant 0 : index
    %c0_83 = arith.constant 0 : index
    %271 = vector.load %arg8[%c0_81, %c0_82, %c0_83] : memref<1x128x32xbf16, #tpu.memory_space<vmem>>, vector<1x128x32xbf16>
    %272 = vector.shape_cast %271 : vector<1x128x32xbf16> to vector<128x32xbf16>
    %cst_84 = arith.constant dense<0.000000e+00> : vector<16x32xf32>
    %273 = tpu.matmul %270, %272, %cst_84 {dimension_numbers = #tpu.dot_dimension_numbers<[1], [0], [0], [1], [0, 0, 1, 1], [], []>} : vector<16x128xbf16>, vector<128x32xbf16>, vector<16x32xf32> -> vector<16x32xf32>
    %274 = arith.index_cast %arg0 : i32 to index
    %c0_85 = arith.constant 0 : index
    %c0_86 = arith.constant 0 : index
    %275 = vector.load %arg16[%274, %c0_85, %c0_86] : memref<2x1x32xf32, #tpu.memory_space<vmem>>, vector<1x1x32xf32>
    %276 = vector.shape_cast %275 : vector<1x1x32xf32> to vector<1x32xf32>
    %277 = vector.broadcast %276 : vector<1x32xf32> to vector<16x32xf32>
    %278 = arith.addf %273, %277 : vector<16x32xf32>
    %279 = arith.addf %224, %278 : vector<16x32xf32>
    %c0_87 = arith.constant 0 : index
    %c0_88 = arith.constant 0 : index
    %280 = vector.load %arg21[%c0_87, %c0_88] : memref<16x32xf32, #tpu.memory_space<vmem>>, vector<16x32xf32>
    tpu.vector_store %arg21[%c0_87, %c0_88], %279 {strides = array<i32>} : memref<16x32xf32, #tpu.memory_space<vmem>>, vector<16x32xf32>,
    %c1_i32 = arith.constant 1 : i32
    %281 = arith.cmpi eq, %arg0, %c1_i32 : i32
    %282 = arith.extui %281 : i1 to i32
    %c0_i32_89 = arith.constant 0 : i32
    %283 = arith.cmpi ne, %282, %c0_i32_89 : i32
    scf.if %283 {
      %c0_90 = arith.constant 0 : index
      %284 = memref.load %arg1[%c0_90] : memref<2xi32, #tpu.memory_space<smem>>
      %c0_i32_91 = arith.constant 0 : i32
      %285 = arith.addi %c0_i32_91, %284 : i32
      %286 = arith.index_cast %285 : i32 to index
      %c0_92 = arith.constant 0 : index
      %287 = vector.load %arg21[%286, %c0_92] : memref<16x32xf32, #tpu.memory_space<vmem>>, vector<1x32xf32>
      %c1 = arith.constant 1 : index
      %288 = memref.load %arg1[%c1] : memref<2xi32, #tpu.memory_space<smem>>
      %c8_i32 = arith.constant 8 : i32
      %289 = arith.addi %c8_i32, %288 : i32
      %290 = arith.index_cast %289 : i32 to index
      %c0_93 = arith.constant 0 : index
      %291 = vector.load %arg21[%290, %c0_93] : memref<16x32xf32, #tpu.memory_space<vmem>>, vector<1x32xf32>
      %292 = tpu.concatenate %287, %291 in 0 : vector<1x32xf32>, vector<1x32xf32> -> vector<2x32xf32>
      %c0_94 = arith.constant 0 : index
      %c0_95 = arith.constant 0 : index
      %293 = vector.load %arg17[%c0_94, %c0_95] : memref<1x32xf32, #tpu.memory_space<vmem>>, vector<1x32xf32>
      %c0_96 = arith.constant 0 : index
      %c0_97 = arith.constant 0 : index
      %294 = vector.load %arg18[%c0_96, %c0_97] : memref<1x32xf32, #tpu.memory_space<vmem>>, vector<1x32xf32>
      %cst_98 = arith.constant dense<0.000000e+00> : vector<2xf32>
      %295 = vector.multi_reduction <add>, %292, %cst_98 [1] : vector<2x32xf32> to vector<2xf32>
      %296 = vector.shape_cast %295 : vector<2xf32> to vector<2x1xf32>
      %cst_99 = arith.constant 3.200000e+01 : f32
      %297 = vector.broadcast %cst_99 : f32 to vector<2x1xf32>
      %298 = arith.divf %296, %297 : vector<2x1xf32>
      %299 = vector.broadcast %298 : vector<2x1xf32> to vector<2x32xf32>
      %300 = arith.subf %292, %299 : vector<2x32xf32>
      %301 = arith.mulf %300, %300 : vector<2x32xf32>
      %cst_100 = arith.constant dense<0.000000e+00> : vector<2xf32>
      %302 = vector.multi_reduction <add>, %301, %cst_100 [1] : vector<2x32xf32> to vector<2xf32>
      %303 = vector.shape_cast %302 : vector<2xf32> to vector<2x1xf32>
      %cst_101 = arith.constant 3.200000e+01 : f32
      %304 = vector.broadcast %cst_101 : f32 to vector<2x1xf32>
      %305 = arith.divf %303, %304 : vector<2x1xf32>
      %306 = vector.broadcast %298 : vector<2x1xf32> to vector<2x32xf32>
      %307 = arith.subf %292, %306 : vector<2x32xf32>
      %cst_102 = arith.constant 9.99999974E-6 : f32
      %308 = vector.broadcast %cst_102 : f32 to vector<2x1xf32>
      %309 = arith.addf %305, %308 : vector<2x1xf32>
      %310 = math.rsqrt %309 : vector<2x1xf32>
      %311 = vector.broadcast %310 : vector<2x1xf32> to vector<2x32xf32>
      %312 = arith.mulf %307, %311 : vector<2x32xf32>
      %313 = vector.broadcast %293 : vector<1x32xf32> to vector<2x32xf32>
      %314 = arith.mulf %312, %313 : vector<2x32xf32>
      %315 = vector.broadcast %294 : vector<1x32xf32> to vector<2x32xf32>
      %316 = arith.addf %314, %315 : vector<2x32xf32>
      %317 = arith.truncf %316 : vector<2x32xf32> to vector<2x32xbf16>
      %c0_103 = arith.constant 0 : index
      %c0_104 = arith.constant 0 : index
      %318 = vector.load %arg19[%c0_103, %c0_104] : memref<32x32xbf16, #tpu.memory_space<vmem>>, vector<32x32xbf16>
      %cst_105 = arith.constant dense<0.000000e+00> : vector<2x32xf32>
      %319 = tpu.matmul %317, %318, %cst_105 {dimension_numbers = #tpu.dot_dimension_numbers<[1], [0], [0], [1], [0, 0, 1, 1], [], []>} : vector<2x32xbf16>, vector<32x32xbf16>, vector<2x32xf32> -> vector<2x32xf32>
      %c0_106 = arith.constant 0 : index
      %c0_107 = arith.constant 0 : index
      %320 = vector.load %arg20[%c0_106, %c0_107] : memref<2x32xf32, #tpu.memory_space<vmem>>, vector<2x32xf32>
      tpu.vector_store %arg20[%c0_106, %c0_107], %319 {strides = array<i32>} : memref<2x32xf32, #tpu.memory_space<vmem>>, vector<2x32xf32>,
    } else {
    }
    return
  }
  func.func @transform_0(%arg0: i32, %arg1: memref<2xi32, #tpu.memory_space<smem>>) -> (i32, i32) {
    %c0_i32 = arith.constant 0 : i32
    %c0_i32_0 = arith.constant 0 : i32
    %c0_i32_1 = arith.constant 0 : i32
    return %c0_i32, %c0_i32_0 : i32, i32
  }
  func.func @transform_1(%arg0: i32, %arg1: memref<2xi32, #tpu.memory_space<smem>>) -> (i32, i32) {
    %c0_i32 = arith.constant 0 : i32
    %c0_i32_0 = arith.constant 0 : i32
    %c0_i32_1 = arith.constant 0 : i32
    return %c0_i32, %c0_i32_0 : i32, i32
  }
  func.func @transform_2(%arg0: i32, %arg1: memref<2xi32, #tpu.memory_space<smem>>) -> (i32, i32) {
    %c0_i32 = arith.constant 0 : i32
    %c0_i32_0 = arith.constant 0 : i32
    %c0_i32_1 = arith.constant 0 : i32
    return %c0_i32, %c0_i32_0 : i32, i32
  }
  func.func @transform_3(%arg0: i32, %arg1: memref<2xi32, #tpu.memory_space<smem>>) -> (i32, i32, i32) {
    %c0_i32 = arith.constant 0 : i32
    %c0_i32_0 = arith.constant 0 : i32
    %c0_i32_1 = arith.constant 0 : i32
    return %arg0, %c0_i32, %c0_i32_0 : i32, i32, i32
  }
  func.func @transform_4(%arg0: i32, %arg1: memref<2xi32, #tpu.memory_space<smem>>) -> (i32, i32, i32) {
    %c0_i32 = arith.constant 0 : i32
    %c0_i32_0 = arith.constant 0 : i32
    %c0_i32_1 = arith.constant 0 : i32
    return %arg0, %c0_i32, %c0_i32_0 : i32, i32, i32
  }
  func.func @transform_5(%arg0: i32, %arg1: memref<2xi32, #tpu.memory_space<smem>>) -> (i32, i32, i32) {
    %c0_i32 = arith.constant 0 : i32
    %c0_i32_0 = arith.constant 0 : i32
    %c0_i32_1 = arith.constant 0 : i32
    return %arg0, %c0_i32, %c0_i32_0 : i32, i32, i32
  }
  func.func @transform_6(%arg0: i32, %arg1: memref<2xi32, #tpu.memory_space<smem>>) -> (i32, i32, i32) {
    %c0_i32 = arith.constant 0 : i32
    %c0_i32_0 = arith.constant 0 : i32
    %c0_i32_1 = arith.constant 0 : i32
    return %arg0, %c0_i32, %c0_i32_0 : i32, i32, i32
  }
  func.func @transform_7(%arg0: i32, %arg1: memref<2xi32, #tpu.memory_space<smem>>) -> (i32, i32, i32) {
    %c0_i32 = arith.constant 0 : i32
    %c0_i32_0 = arith.constant 0 : i32
    %c0_i32_1 = arith.constant 0 : i32
    %c0_i32_2 = arith.constant 0 : i32
    return %c0_i32, %c0_i32_0, %c0_i32_1 : i32, i32, i32
  }
  func.func @transform_8(%arg0: i32, %arg1: memref<2xi32, #tpu.memory_space<smem>>) -> (i32, i32, i32) {
    %c0_i32 = arith.constant 0 : i32
    %c0_i32_0 = arith.constant 0 : i32
    %c0_i32_1 = arith.constant 0 : i32
    %c0_i32_2 = arith.constant 0 : i32
    return %c0_i32, %c0_i32_0, %c0_i32_1 : i32, i32, i32
  }
  func.func @transform_9(%arg0: i32, %arg1: memref<2xi32, #tpu.memory_space<smem>>) -> (i32, i32, i32) {
    %c0_i32 = arith.constant 0 : i32
    %c0_i32_0 = arith.constant 0 : i32
    %c0_i32_1 = arith.constant 0 : i32
    %c0_i32_2 = arith.constant 0 : i32
    return %c0_i32, %c0_i32_0, %c0_i32_1 : i32, i32, i32
  }
  func.func @transform_10(%arg0: i32, %arg1: memref<2xi32, #tpu.memory_space<smem>>) -> (i32, i32, i32) {
    %c0_i32 = arith.constant 0 : i32
    %c0_i32_0 = arith.constant 0 : i32
    %c0_i32_1 = arith.constant 0 : i32
    %c0_i32_2 = arith.constant 0 : i32
    return %c0_i32, %c0_i32_0, %c0_i32_1 : i32, i32, i32
  }
  func.func @transform_11(%arg0: i32, %arg1: memref<2xi32, #tpu.memory_space<smem>>) -> (i32, i32, i32) {
    %c0_i32 = arith.constant 0 : i32
    %c0_i32_0 = arith.constant 0 : i32
    %c0_i32_1 = arith.constant 0 : i32
    %c0_i32_2 = arith.constant 0 : i32
    return %c0_i32, %c0_i32_0, %c0_i32_1 : i32, i32, i32
  }
  func.func @transform_12(%arg0: i32, %arg1: memref<2xi32, #tpu.memory_space<smem>>) -> (i32, i32, i32) {
    %c0_i32 = arith.constant 0 : i32
    %c0_i32_0 = arith.constant 0 : i32
    %c0_i32_1 = arith.constant 0 : i32
    %c0_i32_2 = arith.constant 0 : i32
    return %c0_i32, %c0_i32_0, %c0_i32_1 : i32, i32, i32
  }
  func.func @transform_13(%arg0: i32, %arg1: memref<2xi32, #tpu.memory_space<smem>>) -> (i32, i32, i32) {
    %c0_i32 = arith.constant 0 : i32
    %c0_i32_0 = arith.constant 0 : i32
    %c0_i32_1 = arith.constant 0 : i32
    %c0_i32_2 = arith.constant 0 : i32
    return %c0_i32, %c0_i32_0, %c0_i32_1 : i32, i32, i32
  }
  func.func @transform_14(%arg0: i32, %arg1: memref<2xi32, #tpu.memory_space<smem>>) -> (i32, i32, i32) {
    %c0_i32 = arith.constant 0 : i32
    %c0_i32_0 = arith.constant 0 : i32
    %c0_i32_1 = arith.constant 0 : i32
    %c0_i32_2 = arith.constant 0 : i32
    return %c0_i32, %c0_i32_0, %c0_i32_1 : i32, i32, i32
  }
  func.func @transform_15(%arg0: i32, %arg1: memref<2xi32, #tpu.memory_space<smem>>) -> (i32, i32) {
    %c0_i32 = arith.constant 0 : i32
    %c0_i32_0 = arith.constant 0 : i32
    %c0_i32_1 = arith.constant 0 : i32
    return %c0_i32, %c0_i32_0 : i32, i32
  }
  func.func @transform_16(%arg0: i32, %arg1: memref<2xi32, #tpu.memory_space<smem>>) -> (i32, i32) {
    %c0_i32 = arith.constant 0 : i32
    %c0_i32_0 = arith.constant 0 : i32
    %c0_i32_1 = arith.constant 0 : i32
    return %c0_i32, %c0_i32_0 : i32, i32
  }
  func.func @transform_17(%arg0: i32, %arg1: memref<2xi32, #tpu.memory_space<smem>>) -> (i32, i32) {
    %c0_i32 = arith.constant 0 : i32
    %c0_i32_0 = arith.constant 0 : i32
    %c0_i32_1 = arith.constant 0 : i32
    return %c0_i32, %c0_i32_0 : i32, i32
  }
  func.func @transform_18(%arg0: i32, %arg1: memref<2xi32, #tpu.memory_space<smem>>) -> (i32, i32) {
    %c0_i32 = arith.constant 0 : i32
    %c0_i32_0 = arith.constant 0 : i32
    %c0_i32_1 = arith.constant 0 : i32
    return %c0_i32, %c0_i32_0 : i32, i32
  }
}

</mosaic_0001>

<llo_original>
// kernel: tpu_custom_call.1
$region0: #{tpu_custom_call.1}
  #allocation0 [shape = 'u32[]', space=smem, size = 0x4, offset = 0x4, fixed_abs, tag = 'smem constant byte address 0x4 - core index']
  #allocation1 [shape = 'u32[72,128]{1,0:T(1,128)}', space=vmem, size = 0x9000, scoped, tag = 'internal scratch']
  #allocation2 [shape = 'f32[16,32]{1,0:T(8,128)}', space=vmem, size = 0x2000, scoped, tag = 'scratch operand']
  #allocation3 [shape = 's32[1]{0}', space=sflag, size = 0x4, scoped, tag = 'scoped memory for tpu_custom_call.1']
  #allocation4 [shape = 'u8[512]{0}', space=smem, size = 0x200, scoped, tag = 'prefetched SMEM operand 0']
  %s0 = inlined_call_operand.hbm [shape: s32[2], index: 0, kind: input, shape index: {}]
  %s1 = inlined_call_operand.vmem [shape: f32[16,32], index: 1, kind: input, shape index: {}]
  %s2 = inlined_call_operand.vmem [shape: f32[8,32], index: 2, kind: input, shape index: {}]
  %s3 = inlined_call_operand.vmem [shape: f32[8,8], index: 3, kind: input, shape index: {}]
  %s4 = inlined_call_operand.vmem [shape: bf16[2,32,96], index: 4, kind: input, shape index: {}]
  %s5 = inlined_call_operand.vmem [shape: bf16[2,32,32], index: 5, kind: input, shape index: {}]
  %s6 = inlined_call_operand.vmem [shape: bf16[2,32,128], index: 6, kind: input, shape index: {}]
  %s7 = inlined_call_operand.vmem [shape: bf16[2,128,32], index: 7, kind: input, shape index: {}]
  %s8 = inlined_call_operand.vmem [shape: f32[2,1,32], index: 8, kind: input, shape index: {}]
  %s9 = inlined_call_operand.vmem [shape: f32[2,1,32], index: 9, kind: input, shape index: {}]
  %s10 = inlined_call_operand.vmem [shape: f32[2,1,96], index: 10, kind: input, shape index: {}]
  %s11 = inlined_call_operand.vmem [shape: f32[2,1,32], index: 11, kind: input, shape index: {}]
  %s12 = inlined_call_operand.vmem [shape: f32[2,1,32], index: 12, kind: input, shape index: {}]
  %s13 = inlined_call_operand.vmem [shape: f32[2,1,32], index: 13, kind: input, shape index: {}]
  %s14 = inlined_call_operand.vmem [shape: f32[2,1,128], index: 14, kind: input, shape index: {}]
  %s15 = inlined_call_operand.vmem [shape: f32[2,1,32], index: 15, kind: input, shape index: {}]
  %s16 = inlined_call_operand.vmem [shape: f32[1,32], index: 16, kind: input, shape index: {}]
  %s17 = inlined_call_operand.vmem [shape: f32[1,32], index: 17, kind: input, shape index: {}]
  %s18 = inlined_call_operand.vmem [shape: bf16[32,32], index: 18, kind: input, shape index: {}]
  %s19 = inlined_call_operand.hbm [shape: f32[2,32], index: 19, kind: output, shape index: {}]
  %s20 = sld [smem:[#allocation0]]
  $region113: #{tpu_custom_call.1} parent=0
    _
  %s22 = ssub.s32 1, %s20
  %s23 = scalar_select 0, %s22, %s20
  %s25 = sshll.u32 %s0, 4
  %s26 = int_to_ptr.hbm [resolvable:$true] %s25
  %28 = dma.hbm_to_smem %s26, 16, [#allocation4], [#allocation3]
  %30 = dma.done [#allocation3], 16
  %31 = sfence
  $region1: #{tpu_custom_call.1} parent=0
    #allocation5 [shape = 'u8[1024]{0}', space=vmem, size = 0x400, scoped, tag = 'output window, operand 0, single buffered']
    #allocation6 [shape = 's32[2]{0}', space=sflag, size = 0x8, scoped, tag = 'scoped memory for tpu_custom_call.1']
    %32 = vsyncpa [#allocation6], 0
    loop: start=0, step=1, limit=4
    $region2: #{tpu_custom_call.1} parent=1 // loop_pre_header
      _
    $region3: #{tpu_custom_call.1} parent=1 // loop_header
      %s34 = sphi 0, %s38
      %p35 = scmp.ge.s32.totalorder %s34, 4
      %s42 = sphi 0, %s42
      %s44 = sphi 0, %s42
      %s45 = sphi 0, %s44
      %s59 = sphi 0, %s45
      %s63 = sphi 0, %s63
      %s65 = sphi 0, %s63
      %s66 = sphi 0, %s65
      %s80 = sphi 0, %s66
      %s84 = sphi 0, %s84
      %s86 = sphi 0, %s84
      %s87 = sphi 0, %s86
      %s101 = sphi 0, %s87
      %s107 = sphi 0, %s109
      %s110 = sphi 0, %s107
      %s111 = sphi 0, %s110
      %s127 = sphi 0, %s111
      %s133 = sphi 0, %s135
      %s136 = sphi 0, %s133
      %s137 = sphi 0, %s136
      %s153 = sphi 0, %s137
      %s159 = sphi 0, %s161
      %s162 = sphi 0, %s159
      %s163 = sphi 0, %s162
      %s179 = sphi 0, %s163
      %s185 = sphi 0, %s187
      %s188 = sphi 0, %s185
      %s189 = sphi 0, %s188
      %s205 = sphi 0, %s189
      %s209 = sphi 0, %s209
      %s211 = sphi 0, %s209
      %s212 = sphi 0, %s211
      %s226 = sphi 0, %s212
      %s230 = sphi 0, %s230
      %s232 = sphi 0, %s230
      %s233 = sphi 0, %s232
      %s247 = sphi 0, %s233
      %s251 = sphi 0, %s251
      %s253 = sphi 0, %s251
      %s254 = sphi 0, %s253
      %s268 = sphi 0, %s254
      %s272 = sphi 0, %s272
      %s274 = sphi 0, %s272
      %s275 = sphi 0, %s274
      %s289 = sphi 0, %s275
      %s293 = sphi 0, %s293
      %s295 = sphi 0, %s293
      %s296 = sphi 0, %s295
      %s310 = sphi 0, %s296
      %s314 = sphi 0, %s314
      %s316 = sphi 0, %s314
      %s317 = sphi 0, %s316
      %s331 = sphi 0, %s317
      %s335 = sphi 0, %s335
      %s337 = sphi 0, %s335
      %s338 = sphi 0, %s337
      %s352 = sphi 0, %s338
      %s356 = sphi 0, %s356
      %s358 = sphi 0, %s356
      %s359 = sphi 0, %s358
      %s373 = sphi 0, %s359
      %s377 = sphi 0, %s377
      %s379 = sphi 0, %s377
      %s380 = sphi 0, %s379
      %s394 = sphi 0, %s380
      %s398 = sphi 0, %s398
      %s400 = sphi 0, %s398
      %s401 = sphi 0, %s400
      %s415 = sphi 0, %s401
      %s419 = sphi 0, %s419
      %s421 = sphi 0, %s419
      %s422 = sphi 0, %s421
      %s436 = sphi 0, %s422
      %s440 = sphi 0, %s440
      %s442 = sphi 0, %s440
      %s443 = sphi 0, %s442
      %s457 = sphi 0, %s443
    $region4: #{tpu_custom_call.1} parent=1 // loop_header_branch
      %37 = sbr.rel (%p35) target = $region8
    $region5: #{tpu_custom_call.1} parent=1 // loop_body
      %s39 = ssub.s32 %s34, 1
      %s40 = ssub.s32 %s34, 2
      %s41 = sadd.s32 %s34, 1
      %s43 = sadd.s32 %s42, 1
      %p46 = scmp.eq.s32.totalorder %s34, 1
      %p47 = scmp.ne.s32.totalorder %s42, %s44
      %p48 = scmp.eq.s32.totalorder %s34, 0
      %p49 = por %p47, %p48
      %p50 = scmp.ne.s32.totalorder %s42, %s44
      %p51 = scmp.eq.s32.totalorder %s39, 1
      %p52 = por %p50, %p51
      %p53 = scmp.ne.s32.totalorder %s44, %s45
      %p54 = scmp.eq.s32.totalorder %s39, 0
      %p55 = por %p53, %p54
      %p56 = scmp.ne.s32.totalorder %s44, %s45
      %p57 = scmp.eq.s32.totalorder %s40, 1
      %p58 = por %p56, %p57
      %p60 = scmp.ne.s32.totalorder %s45, %s59
      %p61 = scmp.eq.s32.totalorder %s40, 0
      %p62 = por %p60, %p61
      %s64 = sadd.s32 %s63, 1
      %p67 = scmp.eq.s32.totalorder %s34, 1
      %p68 = scmp.ne.s32.totalorder %s63, %s65
      %p69 = scmp.eq.s32.totalorder %s34, 0
      %p70 = por %p68, %p69
      %p71 = scmp.ne.s32.totalorder %s63, %s65
      %p72 = scmp.eq.s32.totalorder %s39, 1
      %p73 = por %p71, %p72
      %p74 = scmp.ne.s32.totalorder %s65, %s66
      %p75 = scmp.eq.s32.totalorder %s39, 0
      %p76 = por %p74, %p75
      %p77 = scmp.ne.s32.totalorder %s65, %s66
      %p78 = scmp.eq.s32.totalorder %s40, 1
      %p79 = por %p77, %p78
      %p81 = scmp.ne.s32.totalorder %s66, %s80
      %p82 = scmp.eq.s32.totalorder %s40, 0
      %p83 = por %p81, %p82
      %s85 = sadd.s32 %s84, 1
      %p88 = scmp.eq.s32.totalorder %s34, 1
      %p89 = scmp.ne.s32.totalorder %s84, %s86
      %p90 = scmp.eq.s32.totalorder %s34, 0
      %p91 = por %p89, %p90
      %p92 = scmp.ne.s32.totalorder %s84, %s86
      %p93 = scmp.eq.s32.totalorder %s39, 1
      %p94 = por %p92, %p93
      %p95 = scmp.ne.s32.totalorder %s86, %s87
      %p96 = scmp.eq.s32.totalorder %s39, 0
      %p97 = por %p95, %p96
      %p98 = scmp.ne.s32.totalorder %s86, %s87
      %p99 = scmp.eq.s32.totalorder %s40, 1
      %p100 = por %p98, %p99
      %p102 = scmp.ne.s32.totalorder %s87, %s101
      %p103 = scmp.eq.s32.totalorder %s40, 0
      %p104 = por %p102, %p103
      %s105 = ssub.s32 %s34, %s41
      %p106 = scmp.eq.s32.totalorder %s105, 0
      %s108 = sadd.s32 %s107, 1
      %s109 = scalar_select %p106, %s107, %s108
      %p112 = pneg %p106
      %p113 = scmp.eq.s32.totalorder %s34, 1
      %p114 = por %p112, %p113
      %p115 = scmp.ne.s32.totalorder %s107, %s110
      %p116 = scmp.eq.s32.totalorder %s34, 0
      %p117 = por %p115, %p116
      %p118 = scmp.ne.s32.totalorder %s107, %s110
      %p119 = scmp.eq.s32.totalorder %s39, 1
      %p120 = por %p118, %p119
      %p121 = scmp.ne.s32.totalorder %s110, %s111
      %p122 = scmp.eq.s32.totalorder %s39, 0
      %p123 = por %p121, %p122
      %p124 = scmp.ne.s32.totalorder %s110, %s111
      %p125 = scmp.eq.s32.totalorder %s40, 1
      %p126 = por %p124, %p125
      %p128 = scmp.ne.s32.totalorder %s111, %s127
      %p129 = scmp.eq.s32.totalorder %s40, 0
      %p130 = por %p128, %p129
      %s131 = ssub.s32 %s34, %s41
      %p132 = scmp.eq.s32.totalorder %s131, 0
      %s134 = sadd.s32 %s133, 1
      %s135 = scalar_select %p132, %s133, %s134
      %p138 = pneg %p132
      %p139 = scmp.eq.s32.totalorder %s34, 1
      %p140 = por %p138, %p139
      %p141 = scmp.ne.s32.totalorder %s133, %s136
      %p142 = scmp.eq.s32.totalorder %s34, 0
      %p143 = por %p141, %p142
      %p144 = scmp.ne.s32.totalorder %s133, %s136
      %p145 = scmp.eq.s32.totalorder %s39, 1
      %p146 = por %p144, %p145
      %p147 = scmp.ne.s32.totalorder %s136, %s137
      %p148 = scmp.eq.s32.totalorder %s39, 0
      %p149 = por %p147, %p148
      %p150 = scmp.ne.s32.totalorder %s136, %s137
      %p151 = scmp.eq.s32.totalorder %s40, 1
      %p152 = por %p150, %p151
      %p154 = scmp.ne.s32.totalorder %s137, %s153
      %p155 = scmp.eq.s32.totalorder %s40, 0
      %p156 = por %p154, %p155
      %s157 = ssub.s32 %s34, %s41
      %p158 = scmp.eq.s32.totalorder %s157, 0
      %s160 = sadd.s32 %s159, 1
      %s161 = scalar_select %p158, %s159, %s160
      %p164 = pneg %p158
      %p165 = scmp.eq.s32.totalorder %s34, 1
      %p166 = por %p164, %p165
      %p167 = scmp.ne.s32.totalorder %s159, %s162
      %p168 = scmp.eq.s32.totalorder %s34, 0
      %p169 = por %p167, %p168
      %p170 = scmp.ne.s32.totalorder %s159, %s162
      %p171 = scmp.eq.s32.totalorder %s39, 1
      %p172 = por %p170, %p171
      %p173 = scmp.ne.s32.totalorder %s162, %s163
      %p174 = scmp.eq.s32.totalorder %s39, 0
      %p175 = por %p173, %p174
      %p176 = scmp.ne.s32.totalorder %s162, %s163
      %p177 = scmp.eq.s32.totalorder %s40, 1
      %p178 = por %p176, %p177
      %p180 = scmp.ne.s32.totalorder %s163, %s179
      %p181 = scmp.eq.s32.totalorder %s40, 0
      %p182 = por %p180, %p181
      %s183 = ssub.s32 %s34, %s41
      %p184 = scmp.eq.s32.totalorder %s183, 0
      %s186 = sadd.s32 %s185, 1
      %s187 = scalar_select %p184, %s185, %s186
      %p190 = pneg %p184
      %p191 = scmp.eq.s32.totalorder %s34, 1
      %p192 = por %p190, %p191
      %p193 = scmp.ne.s32.totalorder %s185, %s188
      %p194 = scmp.eq.s32.totalorder %s34, 0
      %p195 = por %p193, %p194
      %p196 = scmp.ne.s32.totalorder %s185, %s188
      %p197 = scmp.eq.s32.totalorder %s39, 1
      %p198 = por %p196, %p197
      %p199 = scmp.ne.s32.totalorder %s188, %s189
      %p200 = scmp.eq.s32.totalorder %s39, 0
      %p201 = por %p199, %p200
      %p202 = scmp.ne.s32.totalorder %s188, %s189
      %p203 = scmp.eq.s32.totalorder %s40, 1
      %p204 = por %p202, %p203
      %p206 = scmp.ne.s32.totalorder %s189, %s205
      %p207 = scmp.eq.s32.totalorder %s40, 0
      %p208 = por %p206, %p207
      %s210 = sadd.s32 %s209, 1
      %p213 = scmp.eq.s32.totalorder %s34, 1
      %p214 = scmp.ne.s32.totalorder %s209, %s211
      %p215 = scmp.eq.s32.totalorder %s34, 0
      %p216 = por %p214, %p215
      %p217 = scmp.ne.s32.totalorder %s209, %s211
      %p218 = scmp.eq.s32.totalorder %s39, 1
      %p219 = por %p217, %p218
      %p220 = scmp.ne.s32.totalorder %s211, %s212
      %p221 = scmp.eq.s32.totalorder %s39, 0
      %p222 = por %p220, %p221
      %p223 = scmp.ne.s32.totalorder %s211, %s212
      %p224 = scmp.eq.s32.totalorder %s40, 1
      %p225 = por %p223, %p224
      %p227 = scmp.ne.s32.totalorder %s212, %s226
      %p228 = scmp.eq.s32.totalorder %s40, 0
      %p229 = por %p227, %p228
      %s231 = sadd.s32 %s230, 1
      %p234 = scmp.eq.s32.totalorder %s34, 1
      %p235 = scmp.ne.s32.totalorder %s230, %s232
      %p236 = scmp.eq.s32.totalorder %s34, 0
      %p237 = por %p235, %p236
      %p238 = scmp.ne.s32.totalorder %s230, %s232
      %p239 = scmp.eq.s32.totalorder %s39, 1
      %p240 = por %p238, %p239
      %p241 = scmp.ne.s32.totalorder %s232, %s233
      %p242 = scmp.eq.s32.totalorder %s39, 0
      %p243 = por %p241, %p242
      %p244 = scmp.ne.s32.totalorder %s232, %s233
      %p245 = scmp.eq.s32.totalorder %s40, 1
      %p246 = por %p244, %p245
      %p248 = scmp.ne.s32.totalorder %s233, %s247
      %p249 = scmp.eq.s32.totalorder %s40, 0
      %p250 = por %p248, %p249
      %s252 = sadd.s32 %s251, 1
      %p255 = scmp.eq.s32.totalorder %s34, 1
      %p256 = scmp.ne.s32.totalorder %s251, %s253
      %p257 = scmp.eq.s32.totalorder %s34, 0
      %p258 = por %p256, %p257
      %p259 = scmp.ne.s32.totalorder %s251, %s253
      %p260 = scmp.eq.s32.totalorder %s39, 1
      %p261 = por %p259, %p260
      %p262 = scmp.ne.s32.totalorder %s253, %s254
      %p263 = scmp.eq.s32.totalorder %s39, 0
      %p264 = por %p262, %p263
      %p265 = scmp.ne.s32.totalorder %s253, %s254
      %p266 = scmp.eq.s32.totalorder %s40, 1
      %p267 = por %p265, %p266
      %p269 = scmp.ne.s32.totalorder %s254, %s268
      %p270 = scmp.eq.s32.totalorder %s40, 0
      %p271 = por %p269, %p270
      %s273 = sadd.s32 %s272, 1
      %p276 = scmp.eq.s32.totalorder %s34, 1
      %p277 = scmp.ne.s32.totalorder %s272, %s274
      %p278 = scmp.eq.s32.totalorder %s34, 0
      %p279 = por %p277, %p278
      %p280 = scmp.ne.s32.totalorder %s272, %s274
      %p281 = scmp.eq.s32.totalorder %s39, 1
      %p282 = por %p280, %p281
      %p283 = scmp.ne.s32.totalorder %s274, %s275
      %p284 = scmp.eq.s32.totalorder %s39, 0
      %p285 = por %p283, %p284
      %p286 = scmp.ne.s32.totalorder %s274, %s275
      %p287 = scmp.eq.s32.totalorder %s40, 1
      %p288 = por %p286, %p287
      %p290 = scmp.ne.s32.totalorder %s275, %s289
      %p291 = scmp.eq.s32.totalorder %s40, 0
      %p292 = por %p290, %p291
      %s294 = sadd.s32 %s293, 1
      %p297 = scmp.eq.s32.totalorder %s34, 1
      %p298 = scmp.ne.s32.totalorder %s293, %s295
      %p299 = scmp.eq.s32.totalorder %s34, 0
      %p300 = por %p298, %p299
      %p301 = scmp.ne.s32.totalorder %s293, %s295
      %p302 = scmp.eq.s32.totalorder %s39, 1
      %p303 = por %p301, %p302
      %p304 = scmp.ne.s32.totalorder %s295, %s296
      %p305 = scmp.eq.s32.totalorder %s39, 0
      %p306 = por %p304, %p305
      %p307 = scmp.ne.s32.totalorder %s295, %s296
      %p308 = scmp.eq.s32.totalorder %s40, 1
      %p309 = por %p307, %p308
      %p311 = scmp.ne.s32.totalorder %s296, %s310
      %p312 = scmp.eq.s32.totalorder %s40, 0
      %p313 = por %p311, %p312
      %s315 = sadd.s32 %s314, 1
      %p318 = scmp.eq.s32.totalorder %s34, 1
      %p319 = scmp.ne.s32.totalorder %s314, %s316
      %p320 = scmp.eq.s32.totalorder %s34, 0
      %p321 = por %p319, %p320
      %p322 = scmp.ne.s32.totalorder %s314, %s316
      %p323 = scmp.eq.s32.totalorder %s39, 1
      %p324 = por %p322, %p323
      %p325 = scmp.ne.s32.totalorder %s316, %s317
      %p326 = scmp.eq.s32.totalorder %s39, 0
      %p327 = por %p325, %p326
      %p328 = scmp.ne.s32.totalorder %s316, %s317
      %p329 = scmp.eq.s32.totalorder %s40, 1
      %p330 = por %p328, %p329
      %p332 = scmp.ne.s32.totalorder %s317, %s331
      %p333 = scmp.eq.s32.totalorder %s40, 0
      %p334 = por %p332, %p333
      %s336 = sadd.s32 %s335, 1
      %p339 = scmp.eq.s32.totalorder %s34, 1
      %p340 = scmp.ne.s32.totalorder %s335, %s337
      %p341 = scmp.eq.s32.totalorder %s34, 0
      %p342 = por %p340, %p341
      %p343 = scmp.ne.s32.totalorder %s335, %s337
      %p344 = scmp.eq.s32.totalorder %s39, 1
      %p345 = por %p343, %p344
      %p346 = scmp.ne.s32.totalorder %s337, %s338
      %p347 = scmp.eq.s32.totalorder %s39, 0
      %p348 = por %p346, %p347
      %p349 = scmp.ne.s32.totalorder %s337, %s338
      %p350 = scmp.eq.s32.totalorder %s40, 1
      %p351 = por %p349, %p350
      %p353 = scmp.ne.s32.totalorder %s338, %s352
      %p354 = scmp.eq.s32.totalorder %s40, 0
      %p355 = por %p353, %p354
      %s357 = sadd.s32 %s356, 1
      %p360 = scmp.eq.s32.totalorder %s34, 1
      %p361 = scmp.ne.s32.totalorder %s356, %s358
      %p362 = scmp.eq.s32.totalorder %s34, 0
      %p363 = por %p361, %p362
      %p364 = scmp.ne.s32.totalorder %s356, %s358
      %p365 = scmp.eq.s32.totalorder %s39, 1
      %p366 = por %p364, %p365
      %p367 = scmp.ne.s32.totalorder %s358, %s359
      %p368 = scmp.eq.s32.totalorder %s39, 0
      %p369 = por %p367, %p368
      %p370 = scmp.ne.s32.totalorder %s358, %s359
      %p371 = scmp.eq.s32.totalorder %s40, 1
      %p372 = por %p370, %p371
      %p374 = scmp.ne.s32.totalorder %s359, %s373
      %p375 = scmp.eq.s32.totalorder %s40, 0
      %p376 = por %p374, %p375
      %s378 = sadd.s32 %s377, 1
      %p381 = scmp.eq.s32.totalorder %s34, 1
      %p382 = scmp.ne.s32.totalorder %s377, %s379
      %p383 = scmp.eq.s32.totalorder %s34, 0
      %p384 = por %p382, %p383
      %p385 = scmp.ne.s32.totalorder %s377, %s379
      %p386 = scmp.eq.s32.totalorder %s39, 1
      %p387 = por %p385, %p386
      %p388 = scmp.ne.s32.totalorder %s379, %s380
      %p389 = scmp.eq.s32.totalorder %s39, 0
      %p390 = por %p388, %p389
      %p391 = scmp.ne.s32.totalorder %s379, %s380
      %p392 = scmp.eq.s32.totalorder %s40, 1
      %p393 = por %p391, %p392
      %p395 = scmp.ne.s32.totalorder %s380, %s394
      %p396 = scmp.eq.s32.totalorder %s40, 0
      %p397 = por %p395, %p396
      %s399 = sadd.s32 %s398, 1
      %p402 = scmp.eq.s32.totalorder %s34, 1
      %p403 = scmp.ne.s32.totalorder %s398, %s400
      %p404 = scmp.eq.s32.totalorder %s34, 0
      %p405 = por %p403, %p404
      %p406 = scmp.ne.s32.totalorder %s398, %s400
      %p407 = scmp.eq.s32.totalorder %s39, 1
      %p408 = por %p406, %p407
      %p409 = scmp.ne.s32.totalorder %s400, %s401
      %p410 = scmp.eq.s32.totalorder %s39, 0
      %p411 = por %p409, %p410
      %p412 = scmp.ne.s32.totalorder %s400, %s401
      %p413 = scmp.eq.s32.totalorder %s40, 1
      %p414 = por %p412, %p413
      %p416 = scmp.ne.s32.totalorder %s401, %s415
      %p417 = scmp.eq.s32.totalorder %s40, 0
      %p418 = por %p416, %p417
      %s420 = sadd.s32 %s419, 1
      %p423 = scmp.eq.s32.totalorder %s34, 1
      %p424 = scmp.ne.s32.totalorder %s419, %s421
      %p425 = scmp.eq.s32.totalorder %s34, 0
      %p426 = por %p424, %p425
      %p427 = scmp.ne.s32.totalorder %s419, %s421
      %p428 = scmp.eq.s32.totalorder %s39, 1
      %p429 = por %p427, %p428
      %p430 = scmp.ne.s32.totalorder %s421, %s422
      %p431 = scmp.eq.s32.totalorder %s39, 0
      %p432 = por %p430, %p431
      %p433 = scmp.ne.s32.totalorder %s421, %s422
      %p434 = scmp.eq.s32.totalorder %s40, 1
      %p435 = por %p433, %p434
      %p437 = scmp.ne.s32.totalorder %s422, %s436
      %p438 = scmp.eq.s32.totalorder %s40, 0
      %p439 = por %p437, %p438
      %s441 = sadd.s32 %s440, 1
      %p444 = scmp.eq.s32.totalorder %s34, 1
      %p445 = scmp.ne.s32.totalorder %s440, %s442
      %p446 = scmp.eq.s32.totalorder %s34, 0
      %p447 = por %p445, %p446
      %p448 = scmp.ne.s32.totalorder %s440, %s442
      %p449 = scmp.eq.s32.totalorder %s39, 1
      %p450 = por %p448, %p449
      %p451 = scmp.ne.s32.totalorder %s442, %s443
      %p452 = scmp.eq.s32.totalorder %s39, 0
      %p453 = por %p451, %p452
      %p454 = scmp.ne.s32.totalorder %s442, %s443
      %p455 = scmp.eq.s32.totalorder %s40, 1
      %p456 = por %p454, %p455
      %p458 = scmp.ne.s32.totalorder %s443, %s457
      %p459 = scmp.eq.s32.totalorder %s40, 0
      %p460 = por %p458, %p459
      %p461 = scmp.le.s32.totalorder 1, %s34
      %p462 = scmp.lt.s32.totalorder %s34, 3
      %p463 = pnand %p461, %p462
      %p464 = pneg %p463
      // Predicated region
      $region9: #{tpu_custom_call.1} parent=5 // pred_check
        _
      $region10: #{tpu_custom_call.1} parent=5 // pred_check_branch
        %466 = sbr.rel (%p463) target = $region12
      $region11: #{tpu_custom_call.1} parent=5 // pred_region
        %s467 = ssub.s32 %s34, 1
        // Predicated region
        $region13: #{tpu_custom_call.1} parent=11 // pred_check
          %p468 = pneg %p55
        $region14: #{tpu_custom_call.1} parent=11 // pred_check_branch
          %470 = sbr.rel (%p468) target = $region16
        $region15: #{tpu_custom_call.1} parent=11 // pred_region
          _
        $region16: #{tpu_custom_call.1} parent=11 // pred_fallthru
          _
        // Predicated region
        $region17: #{tpu_custom_call.1} parent=11 // pred_check
          %p471 = pneg %p76
        $region18: #{tpu_custom_call.1} parent=11 // pred_check_branch
          %473 = sbr.rel (%p471) target = $region20
        $region19: #{tpu_custom_call.1} parent=11 // pred_region
          _
        $region20: #{tpu_custom_call.1} parent=11 // pred_fallthru
          _
        // Predicated region
        $region21: #{tpu_custom_call.1} parent=11 // pred_check
          %p474 = pneg %p97
        $region22: #{tpu_custom_call.1} parent=11 // pred_check_branch
          %476 = sbr.rel (%p474) target = $region24
        $region23: #{tpu_custom_call.1} parent=11 // pred_region
          _
        $region24: #{tpu_custom_call.1} parent=11 // pred_fallthru
          _
        // Predicated region
        $region25: #{tpu_custom_call.1} parent=11 // pred_check
          %p477 = pneg %p222
        $region26: #{tpu_custom_call.1} parent=11 // pred_check_branch
          %479 = sbr.rel (%p477) target = $region28
        $region27: #{tpu_custom_call.1} parent=11 // pred_region
          _
        $region28: #{tpu_custom_call.1} parent=11 // pred_fallthru
          _
        // Predicated region
        $region29: #{tpu_custom_call.1} parent=11 // pred_check
          %p480 = pneg %p243
        $region30: #{tpu_custom_call.1} parent=11 // pred_check_branch
          %482 = sbr.rel (%p480) target = $region32
        $region31: #{tpu_custom_call.1} parent=11 // pred_region
          _
        $region32: #{tpu_custom_call.1} parent=11 // pred_fallthru
          _
        // Predicated region
        $region33: #{tpu_custom_call.1} parent=11 // pred_check
          %p483 = pneg %p264
        $region34: #{tpu_custom_call.1} parent=11 // pred_check_branch
          %485 = sbr.rel (%p483) target = $region36
        $region35: #{tpu_custom_call.1} parent=11 // pred_region
          _
        $region36: #{tpu_custom_call.1} parent=11 // pred_fallthru
          _
        // Predicated region
        $region37: #{tpu_custom_call.1} parent=11 // pred_check
          %p486 = pneg %p285
        $region38: #{tpu_custom_call.1} parent=11 // pred_check_branch
          %488 = sbr.rel (%p486) target = $region40
        $region39: #{tpu_custom_call.1} parent=11 // pred_region
          _
        $region40: #{tpu_custom_call.1} parent=11 // pred_fallthru
          _
        // Predicated region
        $region41: #{tpu_custom_call.1} parent=11 // pred_check
          %p489 = pneg %p306
        $region42: #{tpu_custom_call.1} parent=11 // pred_check_branch
          %491 = sbr.rel (%p489) target = $region44
        $region43: #{tpu_custom_call.1} parent=11 // pred_region
          _
        $region44: #{tpu_custom_call.1} parent=11 // pred_fallthru
          _
        // Predicated region
        $region45: #{tpu_custom_call.1} parent=11 // pred_check
          %p492 = pneg %p327
        $region46: #{tpu_custom_call.1} parent=11 // pred_check_branch
          %494 = sbr.rel (%p492) target = $region48
        $region47: #{tpu_custom_call.1} parent=11 // pred_region
          _
        $region48: #{tpu_custom_call.1} parent=11 // pred_fallthru
          _
        // Predicated region
        $region49: #{tpu_custom_call.1} parent=11 // pred_check
          %p495 = pneg %p348
        $region50: #{tpu_custom_call.1} parent=11 // pred_check_branch
          %497 = sbr.rel (%p495) target = $region52
        $region51: #{tpu_custom_call.1} parent=11 // pred_region
          _
        $region52: #{tpu_custom_call.1} parent=11 // pred_fallthru
          _
        // Predicated region
        $region53: #{tpu_custom_call.1} parent=11 // pred_check
          %p498 = pneg %p369
        $region54: #{tpu_custom_call.1} parent=11 // pred_check_branch
          %500 = sbr.rel (%p498) target = $region56
        $region55: #{tpu_custom_call.1} parent=11 // pred_region
          _
        $region56: #{tpu_custom_call.1} parent=11 // pred_fallthru
          _
        // Predicated region
        $region57: #{tpu_custom_call.1} parent=11 // pred_check
          %p501 = pneg %p390
        $region58: #{tpu_custom_call.1} parent=11 // pred_check_branch
          %503 = sbr.rel (%p501) target = $region60
        $region59: #{tpu_custom_call.1} parent=11 // pred_region
          _
        $region60: #{tpu_custom_call.1} parent=11 // pred_fallthru
          _
        // Predicated region
        $region61: #{tpu_custom_call.1} parent=11 // pred_check
          %p504 = pneg %p411
        $region62: #{tpu_custom_call.1} parent=11 // pred_check_branch
          %506 = sbr.rel (%p504) target = $region64
        $region63: #{tpu_custom_call.1} parent=11 // pred_region
          _
        $region64: #{tpu_custom_call.1} parent=11 // pred_fallthru
          _
        // Predicated region
        $region65: #{tpu_custom_call.1} parent=11 // pred_check
          %p507 = pneg %p432
        $region66: #{tpu_custom_call.1} parent=11 // pred_check_branch
          %509 = sbr.rel (%p507) target = $region68
        $region67: #{tpu_custom_call.1} parent=11 // pred_region
          _
        $region68: #{tpu_custom_call.1} parent=11 // pred_fallthru
          _
      $region12: #{tpu_custom_call.1} parent=5 // pred_fallthru
        _
      %p510 = scmp.lt.s32.totalorder %s34, 2
      // Predicated region
      $region69: #{tpu_custom_call.1} parent=5 // pred_check
        %p511 = pneg %p510
      $region70: #{tpu_custom_call.1} parent=5 // pred_check_branch
        %513 = sbr.rel (%p511) target = $region72
      $region71: #{tpu_custom_call.1} parent=5 // pred_region
        // Predicated region
        $region73: #{tpu_custom_call.1} parent=71 // pred_check
          %p514 = pneg %p117
        $region74: #{tpu_custom_call.1} parent=71 // pred_check_branch
          %516 = sbr.rel (%p514) target = $region76
        $region75: #{tpu_custom_call.1} parent=71 // pred_region
          %p517 = scmp.lt.s32.totalorder %s34, 1
          %s518 = scalar_select %p517, %s34, 1
          %s519 = smul.addr %s518, 4
          %s520 = smul.addr %s519, 4
          %s521 = scalar_lea.vmem %s4, %s520
        $region76: #{tpu_custom_call.1} parent=71 // pred_fallthru
          _
        // Predicated region
        $region77: #{tpu_custom_call.1} parent=71 // pred_check
          %p522 = pneg %p143
        $region78: #{tpu_custom_call.1} parent=71 // pred_check_branch
          %524 = sbr.rel (%p522) target = $region80
        $region79: #{tpu_custom_call.1} parent=71 // pred_region
          %p525 = scmp.lt.s32.totalorder %s34, 1
          %s526 = scalar_select %p525, %s34, 1
          %s527 = smul.addr %s526, 4
          %s528 = smul.addr %s527, 4
          %s529 = scalar_lea.vmem %s5, %s528
        $region80: #{tpu_custom_call.1} parent=71 // pred_fallthru
          _
        // Predicated region
        $region81: #{tpu_custom_call.1} parent=71 // pred_check
          %p530 = pneg %p169
        $region82: #{tpu_custom_call.1} parent=71 // pred_check_branch
          %532 = sbr.rel (%p530) target = $region84
        $region83: #{tpu_custom_call.1} parent=71 // pred_region
          %p533 = scmp.lt.s32.totalorder %s34, 1
          %s534 = scalar_select %p533, %s34, 1
          %s535 = smul.addr %s534, 4
          %s536 = smul.addr %s535, 4
          %s537 = scalar_lea.vmem %s6, %s536
        $region84: #{tpu_custom_call.1} parent=71 // pred_fallthru
          _
        // Predicated region
        $region85: #{tpu_custom_call.1} parent=71 // pred_check
          %p538 = pneg %p195
        $region86: #{tpu_custom_call.1} parent=71 // pred_check_branch
          %540 = sbr.rel (%p538) target = $region88
        $region87: #{tpu_custom_call.1} parent=71 // pred_region
          %p541 = scmp.lt.s32.totalorder %s34, 1
          %s542 = scalar_select %p541, %s34, 1
          %s543 = smul.addr %s542, 16
          %s544 = smul.addr %s543, 4
          %s545 = scalar_lea.vmem %s7, %s544
        $region88: #{tpu_custom_call.1} parent=71 // pred_fallthru
          _
      $region72: #{tpu_custom_call.1} parent=5 // pred_fallthru
        _
      %p546 = scmp.le.s32.totalorder 1, %s34
      %p547 = scmp.lt.s32.totalorder %s34, 3
      %p548 = pnand %p546, %p547
      %p549 = pneg %p548
      // Predicated region
      $region89: #{tpu_custom_call.1} parent=5 // pred_check
        _
      $region90: #{tpu_custom_call.1} parent=5 // pred_check_branch
        %551 = sbr.rel (%p548) target = $region92
      $region91: #{tpu_custom_call.1} parent=5 // pred_region
        %s552 = ssub.s32 %s34, 1
        %p553 = pneg %p55
        %p554 = pneg %p52
        %p555 = pneg %p76
        %p556 = pneg %p73
        %p557 = pneg %p97
        %p558 = pneg %p94
        %p559 = scmp.lt.s32.totalorder %s39, 1
        %s560 = scalar_select %p559, %s39, 1
        %s561 = smul.addr %s560, 4
        %s562 = smul.addr %s561, 4
        %s563 = scalar_lea.vmem %s4, %s562
        %p564 = pneg %p123
        %p565 = pneg %p120
        %p566 = scmp.lt.s32.totalorder %s39, 1
        %s567 = scalar_select %p566, %s39, 1
        %s568 = smul.addr %s567, 4
        %s569 = smul.addr %s568, 4
        %s570 = scalar_lea.vmem %s5, %s569
        %p571 = pneg %p149
        %p572 = pneg %p146
        %p573 = scmp.lt.s32.totalorder %s39, 1
        %s574 = scalar_select %p573, %s39, 1
        %s575 = smul.addr %s574, 4
        %s576 = smul.addr %s575, 4
        %s577 = scalar_lea.vmem %s6, %s576
        %p578 = pneg %p175
        %p579 = pneg %p172
        %p580 = scmp.lt.s32.totalorder %s39, 1
        %s581 = scalar_select %p580, %s39, 1
        %s582 = smul.addr %s581, 16
        %s583 = smul.addr %s582, 4
        %s584 = scalar_lea.vmem %s7, %s583
        %p585 = pneg %p201
        %p586 = pneg %p198
        %p587 = pneg %p222
        %p588 = pneg %p219
        %p589 = pneg %p243
        %p590 = pneg %p240
        %p591 = pneg %p264
        %p592 = pneg %p261
        %p593 = pneg %p285
        %p594 = pneg %p282
        %p595 = pneg %p306
        %p596 = pneg %p303
        %p597 = pneg %p327
        %p598 = pneg %p324
        %p599 = pneg %p348
        %p600 = pneg %p345
        %p601 = pneg %p369
        %p602 = pneg %p366
        %p603 = pneg %p390
        %p604 = pneg %p387
        %p605 = pneg %p411
        %p606 = pneg %p408
        %p607 = pneg %p432
        %p608 = pneg %p429
        %p609 = pneg %p453
        %p610 = pneg %p450
        %p611 = scmp.lt.s32.totalorder %s39, 1
        %s612 = scalar_select %p611, %s39, 1
        %s613 = smul.addr %s612, 4
        %s614 = smul.addr %s613, 4
        %s615 = scalar_lea.vmem %s4, %s614
        %p616 = scmp.lt.s32.totalorder %s39, 1
        %s617 = scalar_select %p616, %s39, 1
        %s618 = smul.addr %s617, 4
        %s619 = smul.addr %s618, 4
        %s620 = scalar_lea.vmem %s5, %s619
        %p621 = scmp.lt.s32.totalorder %s39, 1
        %s622 = scalar_select %p621, %s39, 1
        %s623 = smul.addr %s622, 4
        %s624 = smul.addr %s623, 4
        %s625 = scalar_lea.vmem %s6, %s624
        %p626 = scmp.lt.s32.totalorder %s39, 1
        %s627 = scalar_select %p626, %s39, 1
        %s628 = smul.addr %s627, 16
        %s629 = smul.addr %s628, 4
        %s630 = scalar_lea.vmem %s7, %s629
        %p633 = scmp.eq.s32.totalorder %s39, 0
        // Predicated region
        $region93: #{tpu_custom_call.1} parent=91 // pred_check
          %p634 = pneg %p633
        $region94: #{tpu_custom_call.1} parent=91 // pred_check_branch
          %636 = sbr.rel (%p634) target = $region96
        $region95: #{tpu_custom_call.1} parent=91 // pred_region
          %v637 = vld [vmem:[%s2] sm:$0xff]
          %v638 = vld [vmem:[%s1] sm:$0xff]
          %v639 = vadd.f32 %v638, %v637
          %vm640 = vcmask 261120
          %641 = vst.msk [vmem:[#allocation2] sm:$0xff] %vm640, %v639
          %v642 = vld [vmem:[%s1 + $0x8] sm:$0xff]
          %v643 = vadd.f32 %v642, %v637
          %644 = vst.msk [vmem:[#allocation2 + $0x8] sm:$0xff] %vm640, %v643
        $region96: #{tpu_custom_call.1} parent=91 // pred_fallthru
          _
        %v645 = vld [vmem:[#allocation2] sm:$0xff]
        %v646 = vld [vmem:[#allocation2 + $0x8] sm:$0xff]
        %v647 = vld [vmem:[%s3] sm:$0xff]
        %s648 = scalar_lea.vmem %s8, %s39
        %v649 = vld [vmem:[%s648] sm:$0x1]
        %s650 = scalar_lea.vmem %s9, %s39
        %v651 = vld [vmem:[%s650] sm:$0x1]
        %vm652 = vcmask 261120
        %v653 = vsel %vm652, %v645, 0.0
        %654 = vadd.xlane.f32.xlu0 %v653
        %v655 = vpop.xlane.xlu0 %654
        %v656 = vsel %vm652, %v646, 0.0
        %657 = vadd.xlane.f32.xlu0 %v656
        %v658 = vpop.xlane.xlu0 %657
        %v659 = vrcp.pop 32.0
        %v660 = vmul.f32 32.0, %v659
        %v661 = vsub.f32 1.0, %v660
        %v662 = vmul.f32 %v659, %v661
        %v663 = vadd.f32 %v659, %v662
        %vm664 = vweird.f32 %v659
        %v665 = vsel %vm664, %v659, %v663
        %v666 = vmul.f32 %v655, %v665
        %v667 = vmul.f32 %v658, %v665
        %v668 = vsub.f32 %v645, %v666
        %v669 = vsub.f32 %v646, %v667
        %v670 = vmul.f32 %v668, %v668
        %v671 = vmul.f32 %v669, %v669
        %v672 = vsel %vm652, %v670, 0.0
        %673 = vadd.xlane.f32.xlu0 %v672
        %v674 = vpop.xlane.xlu0 %673
        %v675 = vsel %vm652, %v671, 0.0
        %676 = vadd.xlane.f32.xlu0 %v675
        %v677 = vpop.xlane.xlu0 %676
        %v678 = vmul.f32 %v674, %v665
        %v679 = vmul.f32 %v677, %v665
        %v680 = vadd.f32 %v678, 1e-05
        %v681 = vadd.f32 %v679, 1e-05
        %v682 = vrsqrt.pop %v680
        %v683 = vmul.f32 %v682, %v680
        %v684 = vmul.f32 %v683, %v682
        %v685 = vmul.f32 0.5, %v684
        %v686 = vsub.f32 1.5, %v685
        %v687 = vmul.f32 %v682, %v686
        %vm688 = vweird.f32 %v680
        %vm689 = vweird.f32 %v682
        %vm690 = vmor %vm688, %vm689
        %v691 = vsel %vm690, %v682, %v687
        %v692 = vrsqrt.pop %v681
        %v693 = vmul.f32 %v692, %v681
        %v694 = vmul.f32 %v693, %v692
        %v695 = vmul.f32 0.5, %v694
        %v696 = vsub.f32 1.5, %v695
        %v697 = vmul.f32 %v692, %v696
        %vm698 = vweird.f32 %v681
        %vm699 = vweird.f32 %v692
        %vm700 = vmor %vm698, %vm699
        %v701 = vsel %vm700, %v692, %v697
        %v702 = vmul.f32 %v668, %v691
        %v703 = vmul.f32 %v669, %v701
        %v705 = vperm.slane %v649, 0
        %v707 = vmul.f32 %v702, %v705
        %v708 = vmul.f32 %v703, %v705
        %v710 = vperm.slane %v651, 0
        %v712 = vadd.f32 %v707, %v710
        %v713 = vadd.f32 %v708, %v710
        %v714 = vpack.c.bf16 %v713, %v712
        %v715 = vld [vmem:[%s615] sm:$0xf]
        %v716 = vld [vmem:[%s615 + $0x4] sm:$0xf]
        %v717 = vld [vmem:[%s615 + $0x8] sm:$0xf]
        %v718 = vld [vmem:[%s615 + $0xc] sm:$0xf]
        %s719 = scalar_lea.vmem %s10, %s39
        %v720 = vld [vmem:[%s719] sm:$0x1]
        %v722 = vperm.slane %v720, 0
        %v728 = vunpack.c.l.b16 %v715
        %v729 = vunpack.c.l.b16 %v716
        %v730 = vunpack.c.l.b16 %v717
        %v731 = vunpack.c.l.b16 %v718
        %v732 = vpack.c.b16 %v729, %v728
        %v733 = vpack.c.b16 %v731, %v730
        %v737 = vsel %vm652, %v714, 0
        %739 = vmatpush.bf16.msra.mxu0 0
        %740 = vmatpush.bf16.msra.mxu0 0
        %741 = vmatpush.bf16.msra.mxu0 0
        %742 = vmatpush.bf16.msra.mxu0 0
        %743 = vmatpush.bf16.msra.mxu0 0
        %744 = vmatpush.bf16.msra.mxu0 0
        %745 = vmatpush.bf16.msra.mxu0 %v733
        %746 = vmatpush.bf16.msra.mxu0 %v732
        %747 = vmatmul.bf16.gmra.mxu0 %v737
        %v748 = vpop.f32.mrf.mxu0
        %v749 = vadd.f32 %v722, %v748
        %v750 = vpop.f32.mrf.mxu0
        %v751 = vadd.f32 %v722, %v750
        %752 = vdwg.mxu0
        %v753 = vmul.f32 %v749, 0.35355338
        %v754 = vmul.f32 %v751, 0.35355338
        %v755 = vld [vmem:[%s620] sm:$0xf]
        %v756 = vld [vmem:[%s620 + $0x4] sm:$0xf]
        %v757 = vld [vmem:[%s620 + $0x8] sm:$0xf]
        %v758 = vld [vmem:[%s620 + $0xc] sm:$0xf]
        %s759 = scalar_lea.vmem %s11, %s39
        %v760 = vld [vmem:[%s759] sm:$0x1]
        %762 = vrot.lane.b32.xlu0 %v749, 96
        %v763 = vpop.permute.xlu0 %762
        %vm764 = vcmask 64512
        %v766 = vsel %vm764, %v753, 0
        %v768 = vsel %vm764, %v763, 0
        %770 = vmatpush.xpose.msra.mxu0 0.0
        %771 = vmatpush.xpose.msra.mxu0 0.0
        %772 = vmatpush.xpose.msra.mxu0 0.0
        %773 = vmatpush.xpose.msra.mxu0 0.0
        %774 = vmatpush.xpose.msra.mxu0 0.0
        %775 = vmatpush.xpose.msra.mxu0 0.0
        %776 = vmatpush.xpose.msra.mxu0 0.0
        %777 = vmatpush.xpose.msra.mxu0 0.0
        %778 = vmatpush.xpose.msra.mxu0 0.0
        %779 = vmatpush.xpose.msra.mxu0 0.0
        %780 = vmatpush.xpose.msra.mxu0 0.0
        %781 = vmatpush.xpose.msra.mxu0 0.0
        %782 = vmatpush.xpose.msra.mxu0 0.0
        %783 = vmatpush.xpose.msra.mxu0 0.0
        %784 = vmatpush.xpose.msra.mxu0 0.0
        %785 = vmatpush.xpose.msra.mxu0 %v768
        %786 = vmatmul.f32.gmra.mxu0 %v766
        %v787 = vpop.f32.mrf.mxu0
        %v788 = vadd.f32 %v647, %v787
        %789 = vdwg.mxu0
        %v790 = vsel %vm764, %v788, -inf
        %791 = vmax.xlane.f32.xlu0 %v790
        %v792 = vpop.xlane.xlu0 %791
        %v793 = vsub.f32 %v788, %v792
        %v794 = vmul.f32 %v793, 1.442695
        %v795 = vpow.pop %v794
        %v796 = vsel %vm764, %v795, 0.0
        %797 = vadd.xlane.f32.xlu0 %v796
        %v798 = vpop.xlane.xlu0 %797
        %v799 = vrcp.pop %v798
        %v800 = vmul.f32 %v795, %v799
        %801 = vrot.lane.b32.xlu0 %v749, 64
        %v802 = vpop.permute.xlu0 %801
        %v805 = vsel %vm764, %v800, 0
        %807 = vmatpush.msra.mxu0 0.0
        %808 = vmatpush.msra.mxu0 0.0
        %809 = vmatpush.msra.mxu0 0.0
        %810 = vmatpush.msra.mxu0 0.0
        %811 = vmatpush.msra.mxu0 0.0
        %812 = vmatpush.msra.mxu0 0.0
        %813 = vmatpush.msra.mxu0 0.0
        %814 = vmatpush.msra.mxu0 0.0
        %815 = vmatpush.msra.mxu0 0.0
        %816 = vmatpush.msra.mxu0 0.0
        %817 = vmatpush.msra.mxu0 0.0
        %818 = vmatpush.msra.mxu0 0.0
        %819 = vmatpush.msra.mxu0 0.0
        %820 = vmatpush.msra.mxu0 0.0
        %821 = vmatpush.msra.mxu0 0.0
        %822 = vmatpush.msra.mxu0 %v802
        %823 = vmatmul.f32.gmra.mxu0 %v805
        %v824 = vpop.f32.mrf.mxu0
        %v825 = vadd.f32 0.0, %v824
        %826 = vdwg.mxu0
        %v827 = vpack.c.bf16 %v825, %v825
        %828 = vrot.lane.b32.xlu0 %v753, 120
        %v829 = vpop.permute.xlu0 %828
        %830 = vrot.lane.b32.xlu0 %v749, 88
        %v831 = vpop.permute.xlu0 %830
        %v832 = vsel %vm764, %v829, 0
        %v834 = vsel %vm764, %v831, 0
        %836 = vmatpush.xpose.msra.mxu0 0.0
        %837 = vmatpush.xpose.msra.mxu0 0.0
        %838 = vmatpush.xpose.msra.mxu0 0.0
        %839 = vmatpush.xpose.msra.mxu0 0.0
        %840 = vmatpush.xpose.msra.mxu0 0.0
        %841 = vmatpush.xpose.msra.mxu0 0.0
        %842 = vmatpush.xpose.msra.mxu0 0.0
        %843 = vmatpush.xpose.msra.mxu0 0.0
        %844 = vmatpush.xpose.msra.mxu0 0.0
        %845 = vmatpush.xpose.msra.mxu0 0.0
        %846 = vmatpush.xpose.msra.mxu0 0.0
        %847 = vmatpush.xpose.msra.mxu0 0.0
        %848 = vmatpush.xpose.msra.mxu0 0.0
        %849 = vmatpush.xpose.msra.mxu0 0.0
        %850 = vmatpush.xpose.msra.mxu0 0.0
        %851 = vmatpush.xpose.msra.mxu0 %v834
        %852 = vmatmul.f32.gmra.mxu0 %v832
        %v853 = vpop.f32.mrf.mxu0
        %v854 = vadd.f32 %v647, %v853
        %855 = vdwg.mxu0
        %v856 = vsel %vm764, %v854, -inf
        %857 = vmax.xlane.f32.xlu0 %v856
        %v858 = vpop.xlane.xlu0 %857
        %v859 = vsub.f32 %v854, %v858
        %v860 = vmul.f32 %v859, 1.442695
        %v861 = vpow.pop %v860
        %v862 = vsel %vm764, %v861, 0.0
        %863 = vadd.xlane.f32.xlu0 %v862
        %v864 = vpop.xlane.xlu0 %863
        %v865 = vrcp.pop %v864
        %v866 = vmul.f32 %v861, %v865
        %867 = vrot.lane.b32.xlu0 %v749, 56
        %v868 = vpop.permute.xlu0 %867
        %v871 = vsel %vm764, %v866, 0
        %873 = vmatpush.msra.mxu0 0.0
        %874 = vmatpush.msra.mxu0 0.0
        %875 = vmatpush.msra.mxu0 0.0
        %876 = vmatpush.msra.mxu0 0.0
        %877 = vmatpush.msra.mxu0 0.0
        %878 = vmatpush.msra.mxu0 0.0
        %879 = vmatpush.msra.mxu0 0.0
        %880 = vmatpush.msra.mxu0 0.0
        %881 = vmatpush.msra.mxu0 0.0
        %882 = vmatpush.msra.mxu0 0.0
        %883 = vmatpush.msra.mxu0 0.0
        %884 = vmatpush.msra.mxu0 0.0
        %885 = vmatpush.msra.mxu0 0.0
        %886 = vmatpush.msra.mxu0 0.0
        %887 = vmatpush.msra.mxu0 0.0
        %888 = vmatpush.msra.mxu0 %v868
        %889 = vmatmul.f32.gmra.mxu0 %v871
        %v890 = vpop.f32.mrf.mxu0
        %v891 = vadd.f32 0.0, %v890
        %892 = vdwg.mxu0
        %v893 = vpack.c.bf16 %v891, %v891
        %v895 = vsel %vm764, %v893, 0
        %vm897 = vcmask 1043456
        %v899 = vsel %vm897, %v756, 0
        %901 = vmatpush.bf16.msra.mxu0 0
        %902 = vmatpush.bf16.msra.mxu0 0
        %903 = vmatpush.bf16.msra.mxu0 0
        %904 = vmatpush.bf16.msra.mxu0 0
        %905 = vmatpush.bf16.msra.mxu0 0
        %906 = vmatpush.bf16.msra.mxu0 0
        %907 = vmatpush.bf16.msra.mxu0 0
        %908 = vmatpush.bf16.msra.mxu0 %v899
        %909 = vmatmul.bf16.gmra.mxu0 %v895
        %v910 = vpop.f32.mrf.mxu0
        %v911 = vadd.f32 0.0, %v910
        %v912 = vpop.f32.mrf.mxu0
        %913 = vdwg.mxu0
        %v915 = vsel %vm764, %v827, 0
        %v918 = vsel %vm897, %v755, 0
        %920 = vmatpush.bf16.msra.mxu0 0
        %921 = vmatpush.bf16.msra.mxu0 0
        %922 = vmatpush.bf16.msra.mxu0 0
        %923 = vmatpush.bf16.msra.mxu0 0
        %924 = vmatpush.bf16.msra.mxu0 0
        %925 = vmatpush.bf16.msra.mxu0 0
        %926 = vmatpush.bf16.msra.mxu0 0
        %927 = vmatpush.bf16.msra.mxu0 %v918
        %928 = vmatmul.bf16.gmra.mxu0 %v915
        %v929 = vpop.f32.mrf.mxu0
        %v930 = vadd.f32 %v911, %v929
        %v931 = vpop.f32.mrf.mxu0
        %932 = vdwg.mxu0
        %933 = vrot.lane.b32.xlu0 %v753, 112
        %v934 = vpop.permute.xlu0 %933
        %935 = vrot.lane.b32.xlu0 %v749, 80
        %v936 = vpop.permute.xlu0 %935
        %v937 = vsel %vm764, %v934, 0
        %v939 = vsel %vm764, %v936, 0
        %941 = vmatpush.xpose.msra.mxu0 0.0
        %942 = vmatpush.xpose.msra.mxu0 0.0
        %943 = vmatpush.xpose.msra.mxu0 0.0
        %944 = vmatpush.xpose.msra.mxu0 0.0
        %945 = vmatpush.xpose.msra.mxu0 0.0
        %946 = vmatpush.xpose.msra.mxu0 0.0
        %947 = vmatpush.xpose.msra.mxu0 0.0
        %948 = vmatpush.xpose.msra.mxu0 0.0
        %949 = vmatpush.xpose.msra.mxu0 0.0
        %950 = vmatpush.xpose.msra.mxu0 0.0
        %951 = vmatpush.xpose.msra.mxu0 0.0
        %952 = vmatpush.xpose.msra.mxu0 0.0
        %953 = vmatpush.xpose.msra.mxu0 0.0
        %954 = vmatpush.xpose.msra.mxu0 0.0
        %955 = vmatpush.xpose.msra.mxu0 0.0
        %956 = vmatpush.xpose.msra.mxu0 %v939
        %957 = vmatmul.f32.gmra.mxu0 %v937
        %v958 = vpop.f32.mrf.mxu0
        %v959 = vadd.f32 %v647, %v958
        %960 = vdwg.mxu0
        %v961 = vsel %vm764, %v959, -inf
        %962 = vmax.xlane.f32.xlu0 %v961
        %v963 = vpop.xlane.xlu0 %962
        %v964 = vsub.f32 %v959, %v963
        %v965 = vmul.f32 %v964, 1.442695
        %v966 = vpow.pop %v965
        %v967 = vsel %vm764, %v966, 0.0
        %968 = vadd.xlane.f32.xlu0 %v967
        %v969 = vpop.xlane.xlu0 %968
        %v970 = vrcp.pop %v969
        %v971 = vmul.f32 %v966, %v970
        %972 = vrot.lane.b32.xlu0 %v749, 48
        %v973 = vpop.permute.xlu0 %972
        %v976 = vsel %vm764, %v971, 0
        %978 = vmatpush.msra.mxu0 0.0
        %979 = vmatpush.msra.mxu0 0.0
        %980 = vmatpush.msra.mxu0 0.0
        %981 = vmatpush.msra.mxu0 0.0
        %982 = vmatpush.msra.mxu0 0.0
        %983 = vmatpush.msra.mxu0 0.0
        %984 = vmatpush.msra.mxu0 0.0
        %985 = vmatpush.msra.mxu0 0.0
        %986 = vmatpush.msra.mxu0 0.0
        %987 = vmatpush.msra.mxu0 0.0
        %988 = vmatpush.msra.mxu0 0.0
        %989 = vmatpush.msra.mxu0 0.0
        %990 = vmatpush.msra.mxu0 0.0
        %991 = vmatpush.msra.mxu0 0.0
        %992 = vmatpush.msra.mxu0 0.0
        %993 = vmatpush.msra.mxu0 %v973
        %994 = vmatmul.f32.gmra.mxu0 %v976
        %v995 = vpop.f32.mrf.mxu0
        %v996 = vadd.f32 0.0, %v995
        %997 = vdwg.mxu0
        %v998 = vpack.c.bf16 %v996, %v996
        %v1000 = vsel %vm764, %v998, 0
        %v1003 = vsel %vm897, %v757, 0
        %1005 = vmatpush.bf16.msra.mxu0 0
        %1006 = vmatpush.bf16.msra.mxu0 0
        %1007 = vmatpush.bf16.msra.mxu0 0
        %1008 = vmatpush.bf16.msra.mxu0 0
        %1009 = vmatpush.bf16.msra.mxu0 0
        %1010 = vmatpush.bf16.msra.mxu0 0
        %1011 = vmatpush.bf16.msra.mxu0 0
        %1012 = vmatpush.bf16.msra.mxu0 %v1003
        %1013 = vmatmul.bf16.gmra.mxu0 %v1000
        %v1014 = vpop.f32.mrf.mxu0
        %v1015 = vadd.f32 0.0, %v1014
        %v1016 = vpop.f32.mrf.mxu0
        %1017 = vdwg.mxu0
        %v1018 = vadd.f32 %v930, %v1015
        %1019 = vrot.lane.b32.xlu0 %v753, 104
        %v1020 = vpop.permute.xlu0 %1019
        %1021 = vrot.lane.b32.xlu0 %v749, 72
        %v1022 = vpop.permute.xlu0 %1021
        %v1023 = vsel %vm764, %v1020, 0
        %v1025 = vsel %vm764, %v1022, 0
        %1027 = vmatpush.xpose.msra.mxu0 0.0
        %1028 = vmatpush.xpose.msra.mxu0 0.0
        %1029 = vmatpush.xpose.msra.mxu0 0.0
        %1030 = vmatpush.xpose.msra.mxu0 0.0
        %1031 = vmatpush.xpose.msra.mxu0 0.0
        %1032 = vmatpush.xpose.msra.mxu0 0.0
        %1033 = vmatpush.xpose.msra.mxu0 0.0
        %1034 = vmatpush.xpose.msra.mxu0 0.0
        %1035 = vmatpush.xpose.msra.mxu0 0.0
        %1036 = vmatpush.xpose.msra.mxu0 0.0
        %1037 = vmatpush.xpose.msra.mxu0 0.0
        %1038 = vmatpush.xpose.msra.mxu0 0.0
        %1039 = vmatpush.xpose.msra.mxu0 0.0
        %1040 = vmatpush.xpose.msra.mxu0 0.0
        %1041 = vmatpush.xpose.msra.mxu0 0.0
        %1042 = vmatpush.xpose.msra.mxu0 %v1025
        %1043 = vmatmul.f32.gmra.mxu0 %v1023
        %v1044 = vpop.f32.mrf.mxu0
        %v1045 = vadd.f32 %v647, %v1044
        %1046 = vdwg.mxu0
        %v1047 = vsel %vm764, %v1045, -inf
        %1048 = vmax.xlane.f32.xlu0 %v1047
        %v1049 = vpop.xlane.xlu0 %1048
        %v1050 = vsub.f32 %v1045, %v1049
        %v1051 = vmul.f32 %v1050, 1.442695
        %v1052 = vpow.pop %v1051
        %v1053 = vsel %vm764, %v1052, 0.0
        %1054 = vadd.xlane.f32.xlu0 %v1053
        %v1055 = vpop.xlane.xlu0 %1054
        %v1056 = vrcp.pop %v1055
        %v1057 = vmul.f32 %v1052, %v1056
        %1058 = vrot.lane.b32.xlu0 %v749, 40
        %v1059 = vpop.permute.xlu0 %1058
        %v1062 = vsel %vm764, %v1057, 0
        %1064 = vmatpush.msra.mxu0 0.0
        %1065 = vmatpush.msra.mxu0 0.0
        %1066 = vmatpush.msra.mxu0 0.0
        %1067 = vmatpush.msra.mxu0 0.0
        %1068 = vmatpush.msra.mxu0 0.0
        %1069 = vmatpush.msra.mxu0 0.0
        %1070 = vmatpush.msra.mxu0 0.0
        %1071 = vmatpush.msra.mxu0 0.0
        %1072 = vmatpush.msra.mxu0 0.0
        %1073 = vmatpush.msra.mxu0 0.0
        %1074 = vmatpush.msra.mxu0 0.0
        %1075 = vmatpush.msra.mxu0 0.0
        %1076 = vmatpush.msra.mxu0 0.0
        %1077 = vmatpush.msra.mxu0 0.0
        %1078 = vmatpush.msra.mxu0 0.0
        %1079 = vmatpush.msra.mxu0 %v1059
        %1080 = vmatmul.f32.gmra.mxu0 %v1062
        %v1081 = vpop.f32.mrf.mxu0
        %v1082 = vadd.f32 0.0, %v1081
        %1083 = vdwg.mxu0
        %v1084 = vpack.c.bf16 %v1082, %v1082
        %v1086 = vsel %vm764, %v1084, 0
        %v1089 = vsel %vm897, %v758, 0
        %1091 = vmatpush.bf16.msra.mxu0 0
        %1092 = vmatpush.bf16.msra.mxu0 0
        %1093 = vmatpush.bf16.msra.mxu0 0
        %1094 = vmatpush.bf16.msra.mxu0 0
        %1095 = vmatpush.bf16.msra.mxu0 0
        %1096 = vmatpush.bf16.msra.mxu0 0
        %1097 = vmatpush.bf16.msra.mxu0 0
        %1098 = vmatpush.bf16.msra.mxu0 %v1089
        %1099 = vmatmul.bf16.gmra.mxu0 %v1086
        %v1100 = vpop.f32.mrf.mxu0
        %v1101 = vadd.f32 0.0, %v1100
        %v1102 = vpop.f32.mrf.mxu0
        %1103 = vdwg.mxu0
        %v1104 = vadd.f32 %v1018, %v1101
        %v1105 = vadd.f32 %v645, %v1104
        %v1107 = vperm.slane %v760, 0
        %v1109 = vadd.f32 %v1105, %v1107
        %1111 = vrot.lane.b32.xlu0 %v751, 96
        %v1112 = vpop.permute.xlu0 %1111
        %v1114 = vsel %vm764, %v754, 0
        %v1116 = vsel %vm764, %v1112, 0
        %1118 = vmatpush.xpose.msra.mxu0 0.0
        %1119 = vmatpush.xpose.msra.mxu0 0.0
        %1120 = vmatpush.xpose.msra.mxu0 0.0
        %1121 = vmatpush.xpose.msra.mxu0 0.0
        %1122 = vmatpush.xpose.msra.mxu0 0.0
        %1123 = vmatpush.xpose.msra.mxu0 0.0
        %1124 = vmatpush.xpose.msra.mxu0 0.0
        %1125 = vmatpush.xpose.msra.mxu0 0.0
        %1126 = vmatpush.xpose.msra.mxu0 0.0
        %1127 = vmatpush.xpose.msra.mxu0 0.0
        %1128 = vmatpush.xpose.msra.mxu0 0.0
        %1129 = vmatpush.xpose.msra.mxu0 0.0
        %1130 = vmatpush.xpose.msra.mxu0 0.0
        %1131 = vmatpush.xpose.msra.mxu0 0.0
        %1132 = vmatpush.xpose.msra.mxu0 0.0
        %1133 = vmatpush.xpose.msra.mxu0 %v1116
        %1134 = vmatmul.f32.gmra.mxu0 %v1114
        %v1135 = vpop.f32.mrf.mxu0
        %v1136 = vadd.f32 %v647, %v1135
        %1137 = vdwg.mxu0
        %v1138 = vsel %vm764, %v1136, -inf
        %1139 = vmax.xlane.f32.xlu0 %v1138
        %v1140 = vpop.xlane.xlu0 %1139
        %v1141 = vsub.f32 %v1136, %v1140
        %v1142 = vmul.f32 %v1141, 1.442695
        %v1143 = vpow.pop %v1142
        %v1144 = vsel %vm764, %v1143, 0.0
        %1145 = vadd.xlane.f32.xlu0 %v1144
        %v1146 = vpop.xlane.xlu0 %1145
        %v1147 = vrcp.pop %v1146
        %v1148 = vmul.f32 %v1143, %v1147
        %1149 = vrot.lane.b32.xlu0 %v751, 64
        %v1150 = vpop.permute.xlu0 %1149
        %v1153 = vsel %vm764, %v1148, 0
        %1155 = vmatpush.msra.mxu0 0.0
        %1156 = vmatpush.msra.mxu0 0.0
        %1157 = vmatpush.msra.mxu0 0.0
        %1158 = vmatpush.msra.mxu0 0.0
        %1159 = vmatpush.msra.mxu0 0.0
        %1160 = vmatpush.msra.mxu0 0.0
        %1161 = vmatpush.msra.mxu0 0.0
        %1162 = vmatpush.msra.mxu0 0.0
        %1163 = vmatpush.msra.mxu0 0.0
        %1164 = vmatpush.msra.mxu0 0.0
        %1165 = vmatpush.msra.mxu0 0.0
        %1166 = vmatpush.msra.mxu0 0.0
        %1167 = vmatpush.msra.mxu0 0.0
        %1168 = vmatpush.msra.mxu0 0.0
        %1169 = vmatpush.msra.mxu0 0.0
        %1170 = vmatpush.msra.mxu0 %v1150
        %1171 = vmatmul.f32.gmra.mxu0 %v1153
        %v1172 = vpop.f32.mrf.mxu0
        %v1173 = vadd.f32 0.0, %v1172
        %1174 = vdwg.mxu0
        %v1175 = vpack.c.bf16 %v1173, %v1173
        %1176 = vrot.lane.b32.xlu0 %v754, 120
        %v1177 = vpop.permute.xlu0 %1176
        %1178 = vrot.lane.b32.xlu0 %v751, 88
        %v1179 = vpop.permute.xlu0 %1178
        %v1180 = vsel %vm764, %v1177, 0
        %v1182 = vsel %vm764, %v1179, 0
        %1184 = vmatpush.xpose.msra.mxu0 0.0
        %1185 = vmatpush.xpose.msra.mxu0 0.0
        %1186 = vmatpush.xpose.msra.mxu0 0.0
        %1187 = vmatpush.xpose.msra.mxu0 0.0
        %1188 = vmatpush.xpose.msra.mxu0 0.0
        %1189 = vmatpush.xpose.msra.mxu0 0.0
        %1190 = vmatpush.xpose.msra.mxu0 0.0
        %1191 = vmatpush.xpose.msra.mxu0 0.0
        %1192 = vmatpush.xpose.msra.mxu0 0.0
        %1193 = vmatpush.xpose.msra.mxu0 0.0
        %1194 = vmatpush.xpose.msra.mxu0 0.0
        %1195 = vmatpush.xpose.msra.mxu0 0.0
        %1196 = vmatpush.xpose.msra.mxu0 0.0
        %1197 = vmatpush.xpose.msra.mxu0 0.0
        %1198 = vmatpush.xpose.msra.mxu0 0.0
        %1199 = vmatpush.xpose.msra.mxu0 %v1182
        %1200 = vmatmul.f32.gmra.mxu0 %v1180
        %v1201 = vpop.f32.mrf.mxu0
        %v1202 = vadd.f32 %v647, %v1201
        %1203 = vdwg.mxu0
        %v1204 = vsel %vm764, %v1202, -inf
        %1205 = vmax.xlane.f32.xlu0 %v1204
        %v1206 = vpop.xlane.xlu0 %1205
        %v1207 = vsub.f32 %v1202, %v1206
        %v1208 = vmul.f32 %v1207, 1.442695
        %v1209 = vpow.pop %v1208
        %v1210 = vsel %vm764, %v1209, 0.0
        %1211 = vadd.xlane.f32.xlu0 %v1210
        %v1212 = vpop.xlane.xlu0 %1211
        %v1213 = vrcp.pop %v1212
        %v1214 = vmul.f32 %v1209, %v1213
        %1215 = vrot.lane.b32.xlu0 %v751, 56
        %v1216 = vpop.permute.xlu0 %1215
        %v1219 = vsel %vm764, %v1214, 0
        %1221 = vmatpush.msra.mxu0 0.0
        %1222 = vmatpush.msra.mxu0 0.0
        %1223 = vmatpush.msra.mxu0 0.0
        %1224 = vmatpush.msra.mxu0 0.0
        %1225 = vmatpush.msra.mxu0 0.0
        %1226 = vmatpush.msra.mxu0 0.0
        %1227 = vmatpush.msra.mxu0 0.0
        %1228 = vmatpush.msra.mxu0 0.0
        %1229 = vmatpush.msra.mxu0 0.0
        %1230 = vmatpush.msra.mxu0 0.0
        %1231 = vmatpush.msra.mxu0 0.0
        %1232 = vmatpush.msra.mxu0 0.0
        %1233 = vmatpush.msra.mxu0 0.0
        %1234 = vmatpush.msra.mxu0 0.0
        %1235 = vmatpush.msra.mxu0 0.0
        %1236 = vmatpush.msra.mxu0 %v1216
        %1237 = vmatmul.f32.gmra.mxu0 %v1219
        %v1238 = vpop.f32.mrf.mxu0
        %v1239 = vadd.f32 0.0, %v1238
        %1240 = vdwg.mxu0
        %v1241 = vpack.c.bf16 %v1239, %v1239
        %v1243 = vsel %vm764, %v1241, 0
        %1245 = vmatpush.bf16.msra.mxu0 0
        %1246 = vmatpush.bf16.msra.mxu0 0
        %1247 = vmatpush.bf16.msra.mxu0 0
        %1248 = vmatpush.bf16.msra.mxu0 0
        %1249 = vmatpush.bf16.msra.mxu0 0
        %1250 = vmatpush.bf16.msra.mxu0 0
        %1251 = vmatpush.bf16.msra.mxu0 0
        %1252 = vmatpush.bf16.msra.mxu0 %v899
        %1253 = vmatmul.bf16.gmra.mxu0 %v1243
        %v1254 = vpop.f32.mrf.mxu0
        %v1255 = vadd.f32 0.0, %v1254
        %v1256 = vpop.f32.mrf.mxu0
        %1257 = vdwg.mxu0
        %v1259 = vsel %vm764, %v1175, 0
        %1261 = vmatpush.bf16.msra.mxu0 0
        %1262 = vmatpush.bf16.msra.mxu0 0
        %1263 = vmatpush.bf16.msra.mxu0 0
        %1264 = vmatpush.bf16.msra.mxu0 0
        %1265 = vmatpush.bf16.msra.mxu0 0
        %1266 = vmatpush.bf16.msra.mxu0 0
        %1267 = vmatpush.bf16.msra.mxu0 0
        %1268 = vmatpush.bf16.msra.mxu0 %v918
        %1269 = vmatmul.bf16.gmra.mxu0 %v1259
        %v1270 = vpop.f32.mrf.mxu0
        %v1271 = vadd.f32 %v1255, %v1270
        %v1272 = vpop.f32.mrf.mxu0
        %1273 = vdwg.mxu0
        %1274 = vrot.lane.b32.xlu0 %v754, 112
        %v1275 = vpop.permute.xlu0 %1274
        %1276 = vrot.lane.b32.xlu0 %v751, 80
        %v1277 = vpop.permute.xlu0 %1276
        %v1278 = vsel %vm764, %v1275, 0
        %v1280 = vsel %vm764, %v1277, 0
        %1282 = vmatpush.xpose.msra.mxu0 0.0
        %1283 = vmatpush.xpose.msra.mxu0 0.0
        %1284 = vmatpush.xpose.msra.mxu0 0.0
        %1285 = vmatpush.xpose.msra.mxu0 0.0
        %1286 = vmatpush.xpose.msra.mxu0 0.0
        %1287 = vmatpush.xpose.msra.mxu0 0.0
        %1288 = vmatpush.xpose.msra.mxu0 0.0
        %1289 = vmatpush.xpose.msra.mxu0 0.0
        %1290 = vmatpush.xpose.msra.mxu0 0.0
        %1291 = vmatpush.xpose.msra.mxu0 0.0
        %1292 = vmatpush.xpose.msra.mxu0 0.0
        %1293 = vmatpush.xpose.msra.mxu0 0.0
        %1294 = vmatpush.xpose.msra.mxu0 0.0
        %1295 = vmatpush.xpose.msra.mxu0 0.0
        %1296 = vmatpush.xpose.msra.mxu0 0.0
        %1297 = vmatpush.xpose.msra.mxu0 %v1280
        %1298 = vmatmul.f32.gmra.mxu0 %v1278
        %v1299 = vpop.f32.mrf.mxu0
        %v1300 = vadd.f32 %v647, %v1299
        %1301 = vdwg.mxu0
        %v1302 = vsel %vm764, %v1300, -inf
        %1303 = vmax.xlane.f32.xlu0 %v1302
        %v1304 = vpop.xlane.xlu0 %1303
        %v1305 = vsub.f32 %v1300, %v1304
        %v1306 = vmul.f32 %v1305, 1.442695
        %v1307 = vpow.pop %v1306
        %v1308 = vsel %vm764, %v1307, 0.0
        %1309 = vadd.xlane.f32.xlu0 %v1308
        %v1310 = vpop.xlane.xlu0 %1309
        %v1311 = vrcp.pop %v1310
        %v1312 = vmul.f32 %v1307, %v1311
        %1313 = vrot.lane.b32.xlu0 %v751, 48
        %v1314 = vpop.permute.xlu0 %1313
        %v1317 = vsel %vm764, %v1312, 0
        %1319 = vmatpush.msra.mxu0 0.0
        %1320 = vmatpush.msra.mxu0 0.0
        %1321 = vmatpush.msra.mxu0 0.0
        %1322 = vmatpush.msra.mxu0 0.0
        %1323 = vmatpush.msra.mxu0 0.0
        %1324 = vmatpush.msra.mxu0 0.0
        %1325 = vmatpush.msra.mxu0 0.0
        %1326 = vmatpush.msra.mxu0 0.0
        %1327 = vmatpush.msra.mxu0 0.0
        %1328 = vmatpush.msra.mxu0 0.0
        %1329 = vmatpush.msra.mxu0 0.0
        %1330 = vmatpush.msra.mxu0 0.0
        %1331 = vmatpush.msra.mxu0 0.0
        %1332 = vmatpush.msra.mxu0 0.0
        %1333 = vmatpush.msra.mxu0 0.0
        %1334 = vmatpush.msra.mxu0 %v1314
        %1335 = vmatmul.f32.gmra.mxu0 %v1317
        %v1336 = vpop.f32.mrf.mxu0
        %v1337 = vadd.f32 0.0, %v1336
        %1338 = vdwg.mxu0
        %v1339 = vpack.c.bf16 %v1337, %v1337
        %v1341 = vsel %vm764, %v1339, 0
        %1343 = vmatpush.bf16.msra.mxu0 0
        %1344 = vmatpush.bf16.msra.mxu0 0
        %1345 = vmatpush.bf16.msra.mxu0 0
        %1346 = vmatpush.bf16.msra.mxu0 0
        %1347 = vmatpush.bf16.msra.mxu0 0
        %1348 = vmatpush.bf16.msra.mxu0 0
        %1349 = vmatpush.bf16.msra.mxu0 0
        %1350 = vmatpush.bf16.msra.mxu0 %v1003
        %1351 = vmatmul.bf16.gmra.mxu0 %v1341
        %v1352 = vpop.f32.mrf.mxu0
        %v1353 = vadd.f32 0.0, %v1352
        %v1354 = vpop.f32.mrf.mxu0
        %1355 = vdwg.mxu0
        %v1356 = vadd.f32 %v1271, %v1353
        %1357 = vrot.lane.b32.xlu0 %v754, 104
        %v1358 = vpop.permute.xlu0 %1357
        %1359 = vrot.lane.b32.xlu0 %v751, 72
        %v1360 = vpop.permute.xlu0 %1359
        %v1361 = vsel %vm764, %v1358, 0
        %v1363 = vsel %vm764, %v1360, 0
        %1365 = vmatpush.xpose.msra.mxu0 0.0
        %1366 = vmatpush.xpose.msra.mxu0 0.0
        %1367 = vmatpush.xpose.msra.mxu0 0.0
        %1368 = vmatpush.xpose.msra.mxu0 0.0
        %1369 = vmatpush.xpose.msra.mxu0 0.0
        %1370 = vmatpush.xpose.msra.mxu0 0.0
        %1371 = vmatpush.xpose.msra.mxu0 0.0
        %1372 = vmatpush.xpose.msra.mxu0 0.0
        %1373 = vmatpush.xpose.msra.mxu0 0.0
        %1374 = vmatpush.xpose.msra.mxu0 0.0
        %1375 = vmatpush.xpose.msra.mxu0 0.0
        %1376 = vmatpush.xpose.msra.mxu0 0.0
        %1377 = vmatpush.xpose.msra.mxu0 0.0
        %1378 = vmatpush.xpose.msra.mxu0 0.0
        %1379 = vmatpush.xpose.msra.mxu0 0.0
        %1380 = vmatpush.xpose.msra.mxu0 %v1363
        %1381 = vmatmul.f32.gmra.mxu0 %v1361
        %v1382 = vpop.f32.mrf.mxu0
        %v1383 = vadd.f32 %v647, %v1382
        %1384 = vdwg.mxu0
        %v1385 = vsel %vm764, %v1383, -inf
        %1386 = vmax.xlane.f32.xlu0 %v1385
        %v1387 = vpop.xlane.xlu0 %1386
        %v1388 = vsub.f32 %v1383, %v1387
        %v1389 = vmul.f32 %v1388, 1.442695
        %v1390 = vpow.pop %v1389
        %v1391 = vsel %vm764, %v1390, 0.0
        %1392 = vadd.xlane.f32.xlu0 %v1391
        %v1393 = vpop.xlane.xlu0 %1392
        %v1394 = vrcp.pop %v1393
        %v1395 = vmul.f32 %v1390, %v1394
        %1396 = vrot.lane.b32.xlu0 %v751, 40
        %v1397 = vpop.permute.xlu0 %1396
        %v1400 = vsel %vm764, %v1395, 0
        %1402 = vmatpush.msra.mxu0 0.0
        %1403 = vmatpush.msra.mxu0 0.0
        %1404 = vmatpush.msra.mxu0 0.0
        %1405 = vmatpush.msra.mxu0 0.0
        %1406 = vmatpush.msra.mxu0 0.0
        %1407 = vmatpush.msra.mxu0 0.0
        %1408 = vmatpush.msra.mxu0 0.0
        %1409 = vmatpush.msra.mxu0 0.0
        %1410 = vmatpush.msra.mxu0 0.0
        %1411 = vmatpush.msra.mxu0 0.0
        %1412 = vmatpush.msra.mxu0 0.0
        %1413 = vmatpush.msra.mxu0 0.0
        %1414 = vmatpush.msra.mxu0 0.0
        %1415 = vmatpush.msra.mxu0 0.0
        %1416 = vmatpush.msra.mxu0 0.0
        %1417 = vmatpush.msra.mxu0 %v1397
        %1418 = vmatmul.f32.gmra.mxu0 %v1400
        %v1419 = vpop.f32.mrf.mxu0
        %v1420 = vadd.f32 0.0, %v1419
        %1421 = vdwg.mxu0
        %v1422 = vpack.c.bf16 %v1420, %v1420
        %v1424 = vsel %vm764, %v1422, 0
        %1426 = vmatpush.bf16.msra.mxu0 0
        %1427 = vmatpush.bf16.msra.mxu0 0
        %1428 = vmatpush.bf16.msra.mxu0 0
        %1429 = vmatpush.bf16.msra.mxu0 0
        %1430 = vmatpush.bf16.msra.mxu0 0
        %1431 = vmatpush.bf16.msra.mxu0 0
        %1432 = vmatpush.bf16.msra.mxu0 0
        %1433 = vmatpush.bf16.msra.mxu0 %v1089
        %1434 = vmatmul.bf16.gmra.mxu0 %v1424
        %v1435 = vpop.f32.mrf.mxu0
        %v1436 = vadd.f32 0.0, %v1435
        %v1437 = vpop.f32.mrf.mxu0
        %1438 = vdwg.mxu0
        %v1439 = vadd.f32 %v1356, %v1436
        %v1440 = vadd.f32 %v646, %v1439
        %v1441 = vadd.f32 %v1440, %v1107
        %s1442 = scalar_lea.vmem %s12, %s39
        %v1443 = vld [vmem:[%s1442] sm:$0x1]
        %s1444 = scalar_lea.vmem %s13, %s39
        %v1445 = vld [vmem:[%s1444] sm:$0x1]
        %v1446 = vsel %vm652, %v1109, 0.0
        %1447 = vadd.xlane.f32.xlu0 %v1446
        %v1448 = vpop.xlane.xlu0 %1447
        %v1449 = vsel %vm652, %v1441, 0.0
        %1450 = vadd.xlane.f32.xlu0 %v1449
        %v1451 = vpop.xlane.xlu0 %1450
        %v1452 = vmul.f32 %v1448, %v665
        %v1453 = vmul.f32 %v1451, %v665
        %v1454 = vsub.f32 %v1109, %v1452
        %v1455 = vsub.f32 %v1441, %v1453
        %v1456 = vmul.f32 %v1454, %v1454
        %v1457 = vmul.f32 %v1455, %v1455
        %v1458 = vsel %vm652, %v1456, 0.0
        %1459 = vadd.xlane.f32.xlu0 %v1458
        %v1460 = vpop.xlane.xlu0 %1459
        %v1461 = vsel %vm652, %v1457, 0.0
        %1462 = vadd.xlane.f32.xlu0 %v1461
        %v1463 = vpop.xlane.xlu0 %1462
        %v1464 = vmul.f32 %v1460, %v665
        %v1465 = vmul.f32 %v1463, %v665
        %v1466 = vadd.f32 %v1464, 1e-05
        %v1467 = vadd.f32 %v1465, 1e-05
        %v1468 = vrsqrt.pop %v1466
        %v1469 = vmul.f32 %v1468, %v1466
        %v1470 = vmul.f32 %v1469, %v1468
        %v1471 = vmul.f32 0.5, %v1470
        %v1472 = vsub.f32 1.5, %v1471
        %v1473 = vmul.f32 %v1468, %v1472
        %vm1474 = vweird.f32 %v1466
        %vm1475 = vweird.f32 %v1468
        %vm1476 = vmor %vm1474, %vm1475
        %v1477 = vsel %vm1476, %v1468, %v1473
        %v1478 = vrsqrt.pop %v1467
        %v1479 = vmul.f32 %v1478, %v1467
        %v1480 = vmul.f32 %v1479, %v1478
        %v1481 = vmul.f32 0.5, %v1480
        %v1482 = vsub.f32 1.5, %v1481
        %v1483 = vmul.f32 %v1478, %v1482
        %vm1484 = vweird.f32 %v1467
        %vm1485 = vweird.f32 %v1478
        %vm1486 = vmor %vm1484, %vm1485
        %v1487 = vsel %vm1486, %v1478, %v1483
        %v1488 = vmul.f32 %v1454, %v1477
        %v1489 = vmul.f32 %v1455, %v1487
        %v1491 = vperm.slane %v1443, 0
        %v1493 = vmul.f32 %v1488, %v1491
        %v1494 = vmul.f32 %v1489, %v1491
        %v1496 = vperm.slane %v1445, 0
        %v1498 = vadd.f32 %v1493, %v1496
        %v1499 = vadd.f32 %v1494, %v1496
        %v1500 = vpack.c.bf16 %v1499, %v1498
        %v1501 = vld [vmem:[%s625] sm:$0xf]
        %v1502 = vld [vmem:[%s625 + $0x4] sm:$0xf]
        %v1503 = vld [vmem:[%s625 + $0x8] sm:$0xf]
        %v1504 = vld [vmem:[%s625 + $0xc] sm:$0xf]
        %s1505 = scalar_lea.vmem %s14, %s39
        %v1506 = vld [vmem:[%s1505] sm:$0x1]
        %v1508 = vperm.slane %v1506, 0
        %v1514 = vunpack.c.l.b16 %v1501
        %v1515 = vunpack.c.l.b16 %v1502
        %v1516 = vunpack.c.l.b16 %v1503
        %v1517 = vunpack.c.l.b16 %v1504
        %v1518 = vpack.c.b16 %v1515, %v1514
        %v1519 = vpack.c.b16 %v1517, %v1516
        %v1523 = vsel %vm652, %v1500, 0
        %1525 = vmatpush.bf16.msra.mxu0 0
        %1526 = vmatpush.bf16.msra.mxu0 0
        %1527 = vmatpush.bf16.msra.mxu0 0
        %1528 = vmatpush.bf16.msra.mxu0 0
        %1529 = vmatpush.bf16.msra.mxu0 0
        %1530 = vmatpush.bf16.msra.mxu0 0
        %1531 = vmatpush.bf16.msra.mxu0 %v1519
        %1532 = vmatpush.bf16.msra.mxu0 %v1518
        %1533 = vmatmul.bf16.gmra.mxu0 %v1523
        %v1534 = vpop.f32.mrf.mxu0
        %v1535 = vadd.f32 %v1508, %v1534
        %v1536 = vpop.f32.mrf.mxu0
        %v1537 = vadd.f32 %v1508, %v1536
        %1538 = vdwg.mxu0
        %v1539 = vpack.c.bf16 %v1535, %v1535
        %v1540 = vpack.c.bf16 %v1537, %v1537
        %v1541 = vunpack.c.l.bf16 %v1539
        %v1542 = vunpack.c.l.bf16 %v1540
        %v1543 = vmul.f32 %v1541, 1.703125
        %v1544 = vmul.f32 %v1542, 1.703125
        %v1545 = vpack.c.bf16 %v1543, %v1543
        %v1546 = vpack.c.bf16 %v1544, %v1544
        %v1547 = vxor.u32 %v1545, 2147516416
        %v1548 = vxor.u32 %v1546, 2147516416
        %v1549 = vunpack.c.l.bf16 %v1547
        %v1550 = vunpack.c.l.bf16 %v1548
        %v1551 = vmul.f32 %v1549, 1.442695
        %v1552 = vpow.pop %v1551
        %v1553 = vmul.f32 %v1550, 1.442695
        %v1554 = vpow.pop %v1553
        %v1555 = vpack.c.bf16 %v1552, %v1552
        %v1556 = vpack.c.bf16 %v1554, %v1554
        %v1557 = vunpack.c.l.bf16 %v1555
        %v1558 = vunpack.c.l.bf16 %v1556
        %v1559 = vadd.f32 %v1557, 1.0
        %v1560 = vadd.f32 %v1558, 1.0
        %v1561 = vpack.c.bf16 %v1559, %v1559
        %v1562 = vpack.c.bf16 %v1560, %v1560
        %v1563 = vunpack.c.h.bf16 1065369472
        %v1564 = vunpack.c.l.bf16 1065369472
        %v1565 = vunpack.c.h.bf16 %v1561
        %v1566 = vunpack.c.l.bf16 %v1561
        %v1567 = vrcp.pop %v1565
        %v1568 = vmul.f32 %v1563, %v1567
        %v1569 = vrcp.pop %v1566
        %v1570 = vmul.f32 %v1564, %v1569
        %v1571 = vpack.c.bf16 %v1568, %v1570
        %v1572 = vunpack.c.h.bf16 %v1562
        %v1573 = vunpack.c.l.bf16 %v1562
        %v1574 = vrcp.pop %v1572
        %v1575 = vmul.f32 %v1563, %v1574
        %v1576 = vrcp.pop %v1573
        %v1577 = vmul.f32 %v1564, %v1576
        %v1578 = vpack.c.bf16 %v1575, %v1577
        %v1579 = vunpack.c.l.bf16 %v1571
        %v1580 = vunpack.c.l.bf16 %v1578
        %v1581 = vmul.f32 %v1541, %v1579
        %v1582 = vmul.f32 %v1542, %v1580
        %v1583 = vpack.c.bf16 %v1582, %v1581
        %v1584 = vld [vmem:[%s630] sm:$0xf]
        %v1585 = vld [vmem:[%s630 + $0x4] sm:$0xf]
        %v1586 = vld [vmem:[%s630 + $0x8] sm:$0xf]
        %v1587 = vld [vmem:[%s630 + $0xc] sm:$0xf]
        %v1588 = vld [vmem:[%s630 + $0x10] sm:$0xf]
        %v1589 = vld [vmem:[%s630 + $0x14] sm:$0xf]
        %v1590 = vld [vmem:[%s630 + $0x18] sm:$0xf]
        %v1591 = vld [vmem:[%s630 + $0x1c] sm:$0xf]
        %v1592 = vld [vmem:[%s630 + $0x20] sm:$0xf]
        %v1593 = vld [vmem:[%s630 + $0x24] sm:$0xf]
        %v1594 = vld [vmem:[%s630 + $0x28] sm:$0xf]
        %v1595 = vld [vmem:[%s630 + $0x2c] sm:$0xf]
        %v1596 = vld [vmem:[%s630 + $0x30] sm:$0xf]
        %v1597 = vld [vmem:[%s630 + $0x34] sm:$0xf]
        %v1598 = vld [vmem:[%s630 + $0x38] sm:$0xf]
        %v1599 = vld [vmem:[%s630 + $0x3c] sm:$0xf]
        %s1600 = scalar_lea.vmem %s15, %s39
        %v1601 = vld [vmem:[%s1600] sm:$0x1]
        %v1603 = vperm.slane %v1601, 0
        %v1621 = vunpack.c.l.b16 %v1584
        %v1622 = vunpack.c.l.b16 %v1585
        %v1623 = vunpack.c.l.b16 %v1586
        %v1624 = vunpack.c.l.b16 %v1587
        %v1625 = vunpack.c.l.b16 %v1588
        %v1626 = vunpack.c.l.b16 %v1589
        %v1627 = vunpack.c.l.b16 %v1590
        %v1628 = vunpack.c.l.b16 %v1591
        %v1629 = vunpack.c.l.b16 %v1592
        %v1630 = vunpack.c.l.b16 %v1593
        %v1631 = vunpack.c.l.b16 %v1594
        %v1632 = vunpack.c.l.b16 %v1595
        %v1633 = vunpack.c.l.b16 %v1596
        %v1634 = vunpack.c.l.b16 %v1597
        %v1635 = vunpack.c.l.b16 %v1598
        %v1636 = vunpack.c.l.b16 %v1599
        %v1637 = vpack.c.b16 %v1622, %v1621
        %v1638 = vpack.c.b16 %v1624, %v1623
        %v1639 = vpack.c.b16 %v1626, %v1625
        %v1640 = vpack.c.b16 %v1628, %v1627
        %v1641 = vpack.c.b16 %v1630, %v1629
        %v1642 = vpack.c.b16 %v1632, %v1631
        %v1643 = vpack.c.b16 %v1634, %v1633
        %v1644 = vpack.c.b16 %v1636, %v1635
        %1653 = vmatpush.bf16.msra.mxu0 %v1644
        %1654 = vmatpush.bf16.msra.mxu0 %v1643
        %1655 = vmatpush.bf16.msra.mxu0 %v1642
        %1656 = vmatpush.bf16.msra.mxu0 %v1641
        %1657 = vmatpush.bf16.msra.mxu0 %v1640
        %1658 = vmatpush.bf16.msra.mxu0 %v1639
        %1659 = vmatpush.bf16.msra.mxu0 %v1638
        %1660 = vmatpush.bf16.msra.mxu0 %v1637
        %1661 = vmatmul.bf16.gmra.mxu0 %v1583
        %v1662 = vpop.f32.mrf.mxu0
        %v1663 = vadd.f32 %v1603, %v1662
        %v1664 = vpop.f32.mrf.mxu0
        %v1665 = vadd.f32 %v1603, %v1664
        %1666 = vdwg.mxu0
        %v1667 = vadd.f32 %v1109, %v1663
        %v1668 = vadd.f32 %v1441, %v1665
        %1669 = vst.msk [vmem:[#allocation2] sm:$0xff] %vm652, %v1667
        %1670 = vst.msk [vmem:[#allocation2 + $0x8] sm:$0xff] %vm652, %v1668
        %p1671 = scmp.eq.s32.totalorder %s39, 1
        // Predicated region
        $region97: #{tpu_custom_call.1} parent=91 // pred_check
          %p1672 = pneg %p1671
        $region98: #{tpu_custom_call.1} parent=91 // pred_check_branch
          %1674 = sbr.rel (%p1672) target = $region100
        $region99: #{tpu_custom_call.1} parent=91 // pred_region
          %s1675 = sld [smem:[#allocation4]]
          %s1676 = scalar_lea.vmem [#allocation2], %s1675
          %v1677 = vld [vmem:[%s1676] sm:$0x1]
          %s1678 = sld [smem:[#allocation4 + $0x1]]
          %s1679 = sadd.s32 %s1678, 8
          %s1680 = scalar_lea.vmem [#allocation2], %s1679
          %v1681 = vld [vmem:[%s1680] sm:$0x1]
          %v1683 = vrot.slane %v1681, 7
          %vm1685 = vcmask 1040384
          %v1686 = vsel %vm1685, %v1677, %v1683
          %v1687 = vld [vmem:[%s16] sm:$0x1]
          %v1688 = vld [vmem:[%s17] sm:$0x1]
          %vm1689 = vcmask 254976
          %v1690 = vsel %vm1689, %v1686, 0.0
          %1691 = vadd.xlane.f32.xlu0 %v1690
          %v1692 = vpop.xlane.xlu0 %1691
          %v1693 = vmul.f32 %v1692, %v665
          %v1694 = vsub.f32 %v1686, %v1693
          %v1695 = vmul.f32 %v1694, %v1694
          %v1696 = vsel %vm1689, %v1695, 0.0
          %1697 = vadd.xlane.f32.xlu0 %v1696
          %v1698 = vpop.xlane.xlu0 %1697
          %v1699 = vmul.f32 %v1698, %v665
          %v1700 = vadd.f32 %v1699, 1e-05
          %v1701 = vrsqrt.pop %v1700
          %v1702 = vmul.f32 %v1701, %v1700
          %v1703 = vmul.f32 %v1702, %v1701
          %v1704 = vmul.f32 0.5, %v1703
          %v1705 = vsub.f32 1.5, %v1704
          %v1706 = vmul.f32 %v1701, %v1705
          %vm1707 = vweird.f32 %v1700
          %vm1708 = vweird.f32 %v1701
          %vm1709 = vmor %vm1707, %vm1708
          %v1710 = vsel %vm1709, %v1701, %v1706
          %v1711 = vmul.f32 %v1694, %v1710
          %v1713 = vperm.slane %v1687, 0
          %v1715 = vmul.f32 %v1711, %v1713
          %v1717 = vperm.slane %v1688, 0
          %v1719 = vadd.f32 %v1715, %v1717
          %v1720 = vpack.c.bf16 %v1719, %v1719
          %v1721 = vld [vmem:[%s18] sm:$0xf]
          %v1722 = vld [vmem:[%s18 + $0x4] sm:$0xf]
          %v1723 = vld [vmem:[%s18 + $0x8] sm:$0xf]
          %v1724 = vld [vmem:[%s18 + $0xc] sm:$0xf]
          %v1729 = vunpack.c.l.b16 %v1721
          %v1730 = vunpack.c.l.b16 %v1722
          %v1731 = vunpack.c.l.b16 %v1723
          %v1732 = vunpack.c.l.b16 %v1724
          %v1733 = vpack.c.b16 %v1730, %v1729
          %v1734 = vpack.c.b16 %v1732, %v1731
          %v1738 = vsel %vm652, %v1720, 0
          %1740 = vmatpush.bf16.msra.mxu0 0
          %1741 = vmatpush.bf16.msra.mxu0 0
          %1742 = vmatpush.bf16.msra.mxu0 0
          %1743 = vmatpush.bf16.msra.mxu0 0
          %1744 = vmatpush.bf16.msra.mxu0 0
          %1745 = vmatpush.bf16.msra.mxu0 0
          %1746 = vmatpush.bf16.msra.mxu0 %v1734
          %1747 = vmatpush.bf16.msra.mxu0 %v1733
          %1748 = vmatmul.bf16.gmra.mxu0 %v1738
          %v1749 = vpop.f32.mrf.mxu0
          %v1750 = vadd.f32 0.0, %v1749
          %v1751 = vpop.f32.mrf.mxu0
          %1752 = vdwg.mxu0
          %1753 = vst.msk [vmem:[#allocation5] sm:$0x3] %vm1689, %v1750
        $region100: #{tpu_custom_call.1} parent=91 // pred_fallthru
          _
        // Predicated region
        $region101: #{tpu_custom_call.1} parent=91 // pred_check
          %p1754 = pneg %p450
        $region102: #{tpu_custom_call.1} parent=91 // pred_check_branch
          %1756 = sbr.rel (%p1754) target = $region104
        $region103: #{tpu_custom_call.1} parent=91 // pred_region
          %1758 = vsyncadd [#allocation6], 0
          %s1760 = sshll.u32 [#allocation5], 4
          %s1761 = int_to_ptr.vmem [resolvable:$true] %s1760
          %s1762 = sshll.u32 %s19, 4
          %s1763 = int_to_ptr.hbm [resolvable:$true] %s1762
          %1765 = dma.vmem_to_hbm [thread:$0]  %s1761, 32, %s1763, [#allocation6]
        $region104: #{tpu_custom_call.1} parent=91 // pred_fallthru
          _
        // Predicated region
        $region105: #{tpu_custom_call.1} parent=91 // pred_check
          %p1766 = pneg %p450
        $region106: #{tpu_custom_call.1} parent=91 // pred_check_branch
          %1768 = sbr.rel (%p1766) target = $region108
        $region107: #{tpu_custom_call.1} parent=91 // pred_region
          %1770 = dma.done [#allocation6], 32
        $region108: #{tpu_custom_call.1} parent=91 // pred_fallthru
          _
      $region92: #{tpu_custom_call.1} parent=5 // pred_fallthru
        _
      %p1771 = scmp.le.s32.totalorder 2, %s34
      // Predicated region
      $region109: #{tpu_custom_call.1} parent=5 // pred_check
        %p1772 = pneg %p1771
      $region110: #{tpu_custom_call.1} parent=5 // pred_check_branch
        %1774 = sbr.rel (%p1772) target = $region112
      $region111: #{tpu_custom_call.1} parent=5 // pred_region
        %s1775 = ssub.s32 %s34, 2
      $region112: #{tpu_custom_call.1} parent=5 // pred_fallthru
        _
    $region6: #{tpu_custom_call.1} parent=1 // loop_footer
      %s38 = sadd.s32 1, %s34
    $region7: #{tpu_custom_call.1} parent=1 // loop_footer_branch
      %33 = sbr.rel target = $region3
    $region8: #{tpu_custom_call.1} parent=1 // loop_exit
      _
    %1776 = vsyncpa [#allocation6], 1
    %s1777 = scalar_lea.sflag [#allocation6], 1
    %1778 = vsyncpa %s1777, 1

</llo_original>
